<compile_context>
chip_gen: v6e
topology: v6e:2x2x1
jax: 0.10.0
libtpu: 0.0.40
codegen_flags: <defaults>
</compile_context>

<pallas_src>
import functools

import jax
import jax.numpy as jnp
from jax import lax
from jax.experimental import pallas as pl
from jax.experimental.pallas import tpu as pltpu


# ---------------------------------------------------------------------------
# Fused GAM kernel: query/key 1x1 conv, scores -> per-key-batch max -> mean
# over key batches -> softmax over query pixels -> pixel weighting -> conv6.
# ---------------------------------------------------------------------------
def gam_kernel(xq_ref, xk_ref, wq_ref, bq_ref, wk_ref, bk_ref, w6_ref, b6_ref,
               out_ref, q_sc, acc_sc, *, inv_b_scale, tki, use_bf16_scores):
    kb = pl.program_id(1)
    hw_q = out_ref.shape[-1]          # query pixels of this batch (lane axis)
    hw_k = xk_ref.shape[-1]           # key pixels of this batch

    @pl.when(kb == 0)
    def _init():
        # Query projection (C, HW) for this query batch; stays resident in
        # VMEM scratch across the whole key-batch loop.
        q_sc[...] = (jnp.dot(wq_ref[...], xq_ref[...].astype(jnp.float32),
                             preferred_element_type=jnp.float32)
                     + bq_ref[...])
        acc_sc[...] = jnp.zeros_like(acc_sc)

    q = q_sc[...]                                       # (C, HW_q)
    xk = xk_ref[...].astype(jnp.float32)                # (C, HW_k)
    q_dot = q.astype(jnp.bfloat16) if use_bf16_scores else q

    # Stream the key pixels in TKI-wide sub-tiles with a running max so only a
    # (TKI, HW_q) score tile is ever live (never the full N x N matrix).
    nki = hw_k // tki
    run_max = jnp.full((1, hw_q), -jnp.inf, dtype=jnp.float32)
    for i in range(nki):                                # small static trip count
        xk_sub = xk[:, i * tki:(i + 1) * tki]           # (C, TKI), lane-aligned
        # Key projection fused here (2*C^2*TKI flops -- noise at small C).
        k_sub = (jnp.dot(wk_ref[...], xk_sub,
                         preferred_element_type=jnp.float32)
                 + bk_ref[...])                         # (C, TKI)
        k_dot = k_sub.astype(jnp.bfloat16) if use_bf16_scores else k_sub
        # Scores (TKI, HW_q): contract the tiny channel dim of both operands
        # (TN matmul; key stays in lane-dense (C, HW) layout).
        s = lax.dot_general(k_dot, q_dot, (((0,), (0,)), ((), ())),
                            preferred_element_type=jnp.float32)
        run_max = jnp.maximum(run_max, jnp.max(s, axis=0, keepdims=True))
    acc_sc[...] += run_max                              # sum of per-batch maxes

    @pl.when(kb == pl.num_programs(1) - 1)
    def _finalize():
        # mean over key batches * scale, lane-dense softmax over this query
        # batch's pixels, pixel re-weighting and the conv6 1x1 projection.
        row = acc_sc[...] * inv_b_scale                 # (1, HW_q)
        m = jnp.max(row, axis=-1, keepdims=True)
        e = jnp.exp(row - m)
        w = e / jnp.sum(e, axis=-1, keepdims=True)      # exact recip (keeps 1e-4)
        weighted = xq_ref[...].astype(jnp.float32) * w  # (C, HW) * (1, HW)
        out = (jnp.dot(w6_ref[...], weighted,
                       preferred_element_type=jnp.float32)
               + b6_ref[...])
        out_ref[...] = out.astype(out_ref.dtype)        # lane-dense store


def gam_forward(x_nchw, wq, bq, wk, bk, w6, b6, *, use_bf16_scores=False):
    """x_nchw: (B, C, H, W); wq/wk/w6 are PyTorch-style (C_out, C_in) 1x1 convs."""
    B, C, H, W = x_nchw.shape
    HW = H * W
    scale = 1.0 / (C ** 0.5)

    # Free view: each batch's (C, HW) slab is already contiguous in NCHW.
    x_b_c_hw = x_nchw.reshape(B, C, HW)

    # Inner key-pixel sub-tile size (keeps the live score tile to (TKI, HW)).
    # TODO(synk): for very large HW, add a query-pixel grid axis with a
    # two-pass softmax (per-tile logits, then row max/sum), and ragged/-inf
    # masking for HW that is not a multiple of 128.
    tki = 128 if (HW % 128 == 0) else HW

    kernel = functools.partial(gam_kernel, inv_b_scale=scale / B, tki=tki,
                               use_bf16_scores=use_bf16_scores)

    out = pl.pallas_call(
        kernel,
        out_shape=jax.ShapeDtypeStruct((B, C, HW), x_nchw.dtype),
        grid=(B, B),                                       # (query batch, key batch)
        in_specs=[
            pl.BlockSpec((None, C, HW), lambda qb, kb: (qb, 0, 0)),  # x, query side
            pl.BlockSpec((None, C, HW), lambda qb, kb: (kb, 0, 0)),  # x, key side
            pl.BlockSpec((C, C), lambda qb, kb: (0, 0)),             # Wq (resident)
            pl.BlockSpec((C, 1), lambda qb, kb: (0, 0)),             # bq
            pl.BlockSpec((C, C), lambda qb, kb: (0, 0)),             # Wk (resident)
            pl.BlockSpec((C, 1), lambda qb, kb: (0, 0)),             # bk
            pl.BlockSpec((C, C), lambda qb, kb: (0, 0)),             # W6 (resident)
            pl.BlockSpec((C, 1), lambda qb, kb: (0, 0)),             # b6
        ],
        out_specs=pl.BlockSpec((None, C, HW), lambda qb, kb: (qb, 0, 0)),
        scratch_shapes=[
            pltpu.VMEM((C, HW), jnp.float32),   # q for the current query batch
            pltpu.VMEM((1, HW), jnp.float32),   # sum of per-key-batch maxes
        ],
        compiler_params=pltpu.CompilerParams(
            dimension_semantics=("parallel", "arbitrary"),
            vmem_limit_bytes=32 * 1024 * 1024),
    )(x_b_c_hw, x_b_c_hw, wq, bq.reshape(C, 1), wk, bk.reshape(C, 1),
      w6, b6.reshape(C, 1))

    return out.reshape(B, C, H, W)     # free reshape back to NCHW


def gam_reference(x, wq, bq, wk, bk, w6, b6):
    """Pure-JAX transcription of the PyTorch forward (for verification)."""
    B, C, H, W = x.shape
    HW = H * W
    scale = 1.0 / (C ** 0.5)
    pp = jax.lax.Precision.HIGHEST

    conv1x1 = lambda inp, w, b: (jnp.einsum('oc,bchw->bohw', w, inp, precision=pp)
                                 + b[None, :, None, None])

    x_query = conv1x1(x, wq, bq).reshape(B, C, HW)
    x_query = jnp.transpose(x_query, (0, 2, 1)).reshape(-1, C)          # (B*HW, C)
    x_key = conv1x1(x, wk, bk).reshape(B, C, HW)
    x_key = jnp.transpose(x_key, (1, 0, 2)).reshape(C, -1)              # (C, B*HW)
    x_w = jnp.matmul(x_query, x_key, precision=pp)                      # (B*HW, B*HW)
    x_w = x_w.reshape(B * HW, B, HW)
    x_w = jnp.max(x_w, axis=-1)
    x_w = jnp.mean(x_w, axis=-1)
    x_w = x_w.reshape(B, -1) * scale
    x_w = jax.nn.softmax(x_w, axis=-1)
    x_w = x_w.reshape(B, H, W)[:, None, :, :]
    x5 = x * x_w
    return conv1x1(x5, w6, b6)


def c2_msra_fill_weight(key, c_out, c_in):
    # kaiming_normal_(mode="fan_out", nonlinearity="relu") for a 1x1 conv:
    # fan_out = c_out * 1 * 1, std = sqrt(2 / fan_out); bias = 0.
    std = (2.0 / c_out) ** 0.5
    return jax.random.normal(key, (c_out, c_in), dtype=jnp.float32) * std


if __name__ == "__main__":
    B, C, H, W = 2, 4, 16, 16

    key = jax.random.PRNGKey(0)
    kx, kq, kk, k6 = jax.random.split(key, 4)

    x = jax.random.normal(kx, (B, C, H, W), dtype=jnp.float32)

    wq = c2_msra_fill_weight(kq, C, C)
    wk = c2_msra_fill_weight(kk, C, C)
    w6 = c2_msra_fill_weight(k6, C, C)
    bq = jnp.zeros((C,), dtype=jnp.float32)
    bk = jnp.zeros((C,), dtype=jnp.float32)
    b6 = jnp.zeros((C,), dtype=jnp.float32)

    out = gam_forward(x, wq, bq, wk, bk, w6, b6)
    out = jax.block_until_ready(out)

    ref = gam_reference(x, wq, bq, wk, bk, w6, b6)
    assert out.shape == (B, C, H, W)
    err = jnp.max(jnp.abs(out - ref))
    assert jnp.allclose(out, ref, rtol=1e-4, atol=1e-4), f"max abs err = {err}"

    print("KERNEL_OK")
</pallas_src>

<mosaic_0001>
module attributes {stable_mosaic.version = 11 : i64} {
  func.func @gam_kernel(%arg0: i32, %arg1: i32, %arg2: memref<1x4x256xf32, #tpu.memory_space<vmem>>, %arg3: memref<1x4x256xf32, #tpu.memory_space<vmem>>, %arg4: memref<4x4xf32, #tpu.memory_space<vmem>>, %arg5: memref<4x1xf32, #tpu.memory_space<vmem>>, %arg6: memref<4x4xf32, #tpu.memory_space<vmem>>, %arg7: memref<4x1xf32, #tpu.memory_space<vmem>>, %arg8: memref<4x4xf32, #tpu.memory_space<vmem>>, %arg9: memref<4x1xf32, #tpu.memory_space<vmem>>, %arg10: memref<1x4x256xf32, #tpu.memory_space<vmem>>, %arg11: memref<4x256xf32, #tpu.memory_space<vmem>>, %arg12: memref<1x256xf32, #tpu.memory_space<vmem>>) attributes {dimension_semantics = [#tpu.dimension_semantics<parallel>, #tpu.dimension_semantics<arbitrary>], iteration_bounds = array<i64: 2, 2>, scalar_prefetch = 0 : i64, scratch_operands = 2 : i64, tpu.core_type = #tpu.core_type<tc>, window_params = [{transform_indices = @transform_0, window_bounds = array<i64: 1, 4, 256>}, {transform_indices = @transform_1, window_bounds = array<i64: 1, 4, 256>}, {pipeline_mode = #tpu.pipeline_mode<synchronous>, transform_indices = @transform_2, window_bounds = array<i64: 4, 4>}, {pipeline_mode = #tpu.pipeline_mode<synchronous>, transform_indices = @transform_3, window_bounds = array<i64: 4, 1>}, {pipeline_mode = #tpu.pipeline_mode<synchronous>, transform_indices = @transform_4, window_bounds = array<i64: 4, 4>}, {pipeline_mode = #tpu.pipeline_mode<synchronous>, transform_indices = @transform_5, window_bounds = array<i64: 4, 1>}, {pipeline_mode = #tpu.pipeline_mode<synchronous>, transform_indices = @transform_6, window_bounds = array<i64: 4, 4>}, {pipeline_mode = #tpu.pipeline_mode<synchronous>, transform_indices = @transform_7, window_bounds = array<i64: 4, 1>}, {transform_indices = @transform_8, window_bounds = array<i64: 1, 4, 256>}]} {
    %c0_i32 = arith.constant 0 : i32
    %0 = arith.cmpi eq, %arg1, %c0_i32 : i32
    %1 = arith.extui %0 : i1 to i32
    %c0_i32_0 = arith.constant 0 : i32
    %2 = arith.cmpi ne, %1, %c0_i32_0 : i32
    scf.if %2 {
      %c0_24 = arith.constant 0 : index
      %c0_25 = arith.constant 0 : index
      %33 = vector.load %arg4[%c0_24, %c0_25] : memref<4x4xf32, #tpu.memory_space<vmem>>, vector<4x4xf32>
      %c0_26 = arith.constant 0 : index
      %c0_27 = arith.constant 0 : index
      %c0_28 = arith.constant 0 : index
      %34 = vector.load %arg2[%c0_26, %c0_27, %c0_28] : memref<1x4x256xf32, #tpu.memory_space<vmem>>, vector<1x4x256xf32>
      %35 = vector.shape_cast %34 : vector<1x4x256xf32> to vector<4x256xf32>
      %cst_29 = arith.constant dense<0.000000e+00> : vector<4x256xf32>
      %36 = tpu.matmul %33, %35, %cst_29 {dimension_numbers = #tpu.dot_dimension_numbers<[1], [0], [0], [1], [0, 0, 1, 1], [], []>} : vector<4x4xf32>, vector<4x256xf32>, vector<4x256xf32> -> vector<4x256xf32>
      %c0_30 = arith.constant 0 : index
      %c0_31 = arith.constant 0 : index
      %37 = vector.load %arg5[%c0_30, %c0_31] : memref<4x1xf32, #tpu.memory_space<vmem>>, vector<4x1xf32>
      %38 = vector.broadcast %37 : vector<4x1xf32> to vector<4x256xf32>
      %39 = arith.addf %36, %38 : vector<4x256xf32>
      %c0_32 = arith.constant 0 : index
      %c0_33 = arith.constant 0 : index
      %40 = vector.load %arg11[%c0_32, %c0_33] : memref<4x256xf32, #tpu.memory_space<vmem>>, vector<4x256xf32>
      tpu.vector_store %arg11[%c0_32, %c0_33], %39 {strides = array<i32>} : memref<4x256xf32, #tpu.memory_space<vmem>>, vector<4x256xf32>,
      %cst_34 = arith.constant 0.000000e+00 : f32
      %41 = vector.broadcast %cst_34 : f32 to vector<1x256xf32>
      %c0_35 = arith.constant 0 : index
      %c0_36 = arith.constant 0 : index
      %42 = vector.load %arg12[%c0_35, %c0_36] : memref<1x256xf32, #tpu.memory_space<vmem>>, vector<1x256xf32>
      tpu.vector_store %arg12[%c0_35, %c0_36], %41 {strides = array<i32>} : memref<1x256xf32, #tpu.memory_space<vmem>>, vector<1x256xf32>,
    } else {
    }
    %c0 = arith.constant 0 : index
    %c0_1 = arith.constant 0 : index
    %3 = vector.load %arg11[%c0, %c0_1] : memref<4x256xf32, #tpu.memory_space<vmem>>, vector<4x256xf32>
    %c0_2 = arith.constant 0 : index
    %c0_3 = arith.constant 0 : index
    %c0_4 = arith.constant 0 : index
    %4 = vector.load %arg3[%c0_2, %c0_3, %c0_4] : memref<1x4x256xf32, #tpu.memory_space<vmem>>, vector<1x4x256xf32>
    %5 = vector.shape_cast %4 : vector<1x4x256xf32> to vector<4x256xf32>
    %cst = arith.constant 0xFF800000 : f32
    %6 = vector.broadcast %cst : f32 to vector<1x256xf32>
    %7 = vector.extract_strided_slice %5 {offsets = [0, 0], sizes = [4, 128], strides = [1, 1]} : vector<4x256xf32> to vector<4x128xf32>
    %c0_5 = arith.constant 0 : index
    %c0_6 = arith.constant 0 : index
    %8 = vector.load %arg6[%c0_5, %c0_6] : memref<4x4xf32, #tpu.memory_space<vmem>>, vector<4x4xf32>
    %cst_7 = arith.constant dense<0.000000e+00> : vector<4x128xf32>
    %9 = tpu.matmul %8, %7, %cst_7 {dimension_numbers = #tpu.dot_dimension_numbers<[1], [0], [0], [1], [0, 0, 1, 1], [], []>} : vector<4x4xf32>, vector<4x128xf32>, vector<4x128xf32> -> vector<4x128xf32>
    %c0_8 = arith.constant 0 : index
    %c0_9 = arith.constant 0 : index
    %10 = vector.load %arg7[%c0_8, %c0_9] : memref<4x1xf32, #tpu.memory_space<vmem>>, vector<4x1xf32>
    %11 = vector.broadcast %10 : vector<4x1xf32> to vector<4x128xf32>
    %12 = arith.addf %9, %11 : vector<4x128xf32>
    %cst_10 = arith.constant dense<0.000000e+00> : vector<128x256xf32>
    %13 = tpu.matmul %12, %3, %cst_10 {dimension_numbers = #tpu.dot_dimension_numbers<[0], [0], [1], [1], [0, 1, 1, 1], [], []>} : vector<4x128xf32>, vector<4x256xf32>, vector<128x256xf32> -> vector<128x256xf32>
    %cst_11 = arith.constant dense<0xFF800000> : vector<256xf32>
    %14 = vector.multi_reduction <maximumf>, %13, %cst_11 [0] : vector<128x256xf32> to vector<256xf32>
    %15 = vector.shape_cast %14 : vector<256xf32> to vector<1x256xf32>
    %16 = arith.maximumf %6, %15 : vector<1x256xf32>
    %17 = vector.extract_strided_slice %5 {offsets = [0, 128], sizes = [4, 128], strides = [1, 1]} : vector<4x256xf32> to vector<4x128xf32>
    %c0_12 = arith.constant 0 : index
    %c0_13 = arith.constant 0 : index
    %18 = vector.load %arg6[%c0_12, %c0_13] : memref<4x4xf32, #tpu.memory_space<vmem>>, vector<4x4xf32>
    %cst_14 = arith.constant dense<0.000000e+00> : vector<4x128xf32>
    %19 = tpu.matmul %18, %17, %cst_14 {dimension_numbers = #tpu.dot_dimension_numbers<[1], [0], [0], [1], [0, 0, 1, 1], [], []>} : vector<4x4xf32>, vector<4x128xf32>, vector<4x128xf32> -> vector<4x128xf32>
    %c0_15 = arith.constant 0 : index
    %c0_16 = arith.constant 0 : index
    %20 = vector.load %arg7[%c0_15, %c0_16] : memref<4x1xf32, #tpu.memory_space<vmem>>, vector<4x1xf32>
    %21 = vector.broadcast %20 : vector<4x1xf32> to vector<4x128xf32>
    %22 = arith.addf %19, %21 : vector<4x128xf32>
    %cst_17 = arith.constant dense<0.000000e+00> : vector<128x256xf32>
    %23 = tpu.matmul %22, %3, %cst_17 {dimension_numbers = #tpu.dot_dimension_numbers<[0], [0], [1], [1], [0, 1, 1, 1], [], []>} : vector<4x128xf32>, vector<4x256xf32>, vector<128x256xf32> -> vector<128x256xf32>
    %cst_18 = arith.constant dense<0xFF800000> : vector<256xf32>
    %24 = vector.multi_reduction <maximumf>, %23, %cst_18 [0] : vector<128x256xf32> to vector<256xf32>
    %25 = vector.shape_cast %24 : vector<256xf32> to vector<1x256xf32>
    %26 = arith.maximumf %16, %25 : vector<1x256xf32>
    %c0_19 = arith.constant 0 : index
    %c0_20 = arith.constant 0 : index
    %27 = vector.load %arg12[%c0_19, %c0_20] : memref<1x256xf32, #tpu.memory_space<vmem>>, vector<1x256xf32>
    %28 = arith.addf %27, %26 : vector<1x256xf32>
    %c0_21 = arith.constant 0 : index
    %c0_22 = arith.constant 0 : index
    %29 = vector.load %arg12[%c0_21, %c0_22] : memref<1x256xf32, #tpu.memory_space<vmem>>, vector<1x256xf32>
    tpu.vector_store %arg12[%c0_21, %c0_22], %28 {strides = array<i32>} : memref<1x256xf32, #tpu.memory_space<vmem>>, vector<1x256xf32>,
    %c1_i32 = arith.constant 1 : i32
    %30 = arith.cmpi eq, %arg1, %c1_i32 : i32
    %31 = arith.extui %30 : i1 to i32
    %c0_i32_23 = arith.constant 0 : i32
    %32 = arith.cmpi ne, %31, %c0_i32_23 : i32
    scf.if %32 {
      %c0_24 = arith.constant 0 : index
      %c0_25 = arith.constant 0 : index
      %33 = vector.load %arg12[%c0_24, %c0_25] : memref<1x256xf32, #tpu.memory_space<vmem>>, vector<1x256xf32>
      %cst_26 = arith.constant 2.500000e-01 : f32
      %34 = vector.broadcast %cst_26 : f32 to vector<1x256xf32>
      %35 = arith.mulf %33, %34 : vector<1x256xf32>
      %cst_27 = arith.constant dense<0xFF800000> : vector<1xf32>
      %36 = vector.multi_reduction <maximumf>, %35, %cst_27 [1] : vector<1x256xf32> to vector<1xf32>
      %37 = vector.shape_cast %36 : vector<1xf32> to vector<1x1xf32>
      %38 = vector.broadcast %37 : vector<1x1xf32> to vector<1x256xf32>
      %39 = arith.subf %35, %38 : vector<1x256xf32>
      %40 = math.exp %39 : vector<1x256xf32>
      %cst_28 = arith.constant dense<0.000000e+00> : vector<1xf32>
      %41 = vector.multi_reduction <add>, %40, %cst_28 [1] : vector<1x256xf32> to vector<1xf32>
      %42 = vector.shape_cast %41 : vector<1xf32> to vector<1x1xf32>
      %43 = vector.broadcast %42 : vector<1x1xf32> to vector<1x256xf32>
      %44 = arith.divf %40, %43 : vector<1x256xf32>
      %c0_29 = arith.constant 0 : index
      %c0_30 = arith.constant 0 : index
      %c0_31 = arith.constant 0 : index
      %45 = vector.load %arg2[%c0_29, %c0_30, %c0_31] : memref<1x4x256xf32, #tpu.memory_space<vmem>>, vector<1x4x256xf32>
      %46 = vector.shape_cast %45 : vector<1x4x256xf32> to vector<4x256xf32>
      %47 = vector.broadcast %44 : vector<1x256xf32> to vector<4x256xf32>
      %48 = arith.mulf %46, %47 : vector<4x256xf32>
      %c0_32 = arith.constant 0 : index
      %c0_33 = arith.constant 0 : index
      %49 = vector.load %arg8[%c0_32, %c0_33] : memref<4x4xf32, #tpu.memory_space<vmem>>, vector<4x4xf32>
      %cst_34 = arith.constant dense<0.000000e+00> : vector<4x256xf32>
      %50 = tpu.matmul %49, %48, %cst_34 {dimension_numbers = #tpu.dot_dimension_numbers<[1], [0], [0], [1], [0, 0, 1, 1], [], []>} : vector<4x4xf32>, vector<4x256xf32>, vector<4x256xf32> -> vector<4x256xf32>
      %c0_35 = arith.constant 0 : index
      %c0_36 = arith.constant 0 : index
      %51 = vector.load %arg9[%c0_35, %c0_36] : memref<4x1xf32, #tpu.memory_space<vmem>>, vector<4x1xf32>
      %52 = vector.broadcast %51 : vector<4x1xf32> to vector<4x256xf32>
      %53 = arith.addf %50, %52 : vector<4x256xf32>
      %c0_37 = arith.constant 0 : index
      %c0_38 = arith.constant 0 : index
      %c0_39 = arith.constant 0 : index
      %54 = vector.load %arg10[%c0_37, %c0_38, %c0_39] : memref<1x4x256xf32, #tpu.memory_space<vmem>>, vector<1x4x256xf32>
      %55 = vector.shape_cast %54 : vector<1x4x256xf32> to vector<4x256xf32>
      %56 = vector.shape_cast %53 : vector<4x256xf32> to vector<1x4x256xf32>
      tpu.vector_store %arg10[%c0_37, %c0_38, %c0_39], %56 {strides = array<i32>} : memref<1x4x256xf32, #tpu.memory_space<vmem>>, vector<1x4x256xf32>,
    } else {
    }
    return
  }
  func.func @transform_0(%arg0: i32, %arg1: i32) -> (i32, i32, i32) {
    %c0_i32 = arith.constant 0 : i32
    %c0_i32_0 = arith.constant 0 : i32
    %c0_i32_1 = arith.constant 0 : i32
    return %arg0, %c0_i32, %c0_i32_0 : i32, i32, i32
  }
  func.func @transform_1(%arg0: i32, %arg1: i32) -> (i32, i32, i32) {
    %c0_i32 = arith.constant 0 : i32
    %c0_i32_0 = arith.constant 0 : i32
    %c0_i32_1 = arith.constant 0 : i32
    return %arg1, %c0_i32, %c0_i32_0 : i32, i32, i32
  }
  func.func @transform_2(%arg0: i32, %arg1: i32) -> (i32, i32) {
    %c0_i32 = arith.constant 0 : i32
    %c0_i32_0 = arith.constant 0 : i32
    %c0_i32_1 = arith.constant 0 : i32
    return %c0_i32, %c0_i32_0 : i32, i32
  }
  func.func @transform_3(%arg0: i32, %arg1: i32) -> (i32, i32) {
    %c0_i32 = arith.constant 0 : i32
    %c0_i32_0 = arith.constant 0 : i32
    %c0_i32_1 = arith.constant 0 : i32
    return %c0_i32, %c0_i32_0 : i32, i32
  }
  func.func @transform_4(%arg0: i32, %arg1: i32) -> (i32, i32) {
    %c0_i32 = arith.constant 0 : i32
    %c0_i32_0 = arith.constant 0 : i32
    %c0_i32_1 = arith.constant 0 : i32
    return %c0_i32, %c0_i32_0 : i32, i32
  }
  func.func @transform_5(%arg0: i32, %arg1: i32) -> (i32, i32) {
    %c0_i32 = arith.constant 0 : i32
    %c0_i32_0 = arith.constant 0 : i32
    %c0_i32_1 = arith.constant 0 : i32
    return %c0_i32, %c0_i32_0 : i32, i32
  }
  func.func @transform_6(%arg0: i32, %arg1: i32) -> (i32, i32) {
    %c0_i32 = arith.constant 0 : i32
    %c0_i32_0 = arith.constant 0 : i32
    %c0_i32_1 = arith.constant 0 : i32
    return %c0_i32, %c0_i32_0 : i32, i32
  }
  func.func @transform_7(%arg0: i32, %arg1: i32) -> (i32, i32) {
    %c0_i32 = arith.constant 0 : i32
    %c0_i32_0 = arith.constant 0 : i32
    %c0_i32_1 = arith.constant 0 : i32
    return %c0_i32, %c0_i32_0 : i32, i32
  }
  func.func @transform_8(%arg0: i32, %arg1: i32) -> (i32, i32, i32) {
    %c0_i32 = arith.constant 0 : i32
    %c0_i32_0 = arith.constant 0 : i32
    %c0_i32_1 = arith.constant 0 : i32
    return %arg0, %c0_i32, %c0_i32_0 : i32, i32, i32
  }
}

</mosaic_0001>

<llo_original>
// kernel: tpu_custom_call.1
$region0: #{tpu_custom_call.1}
  #allocation0 [shape = 'u32[]', space=smem, size = 0x4, offset = 0x4, fixed_abs, tag = 'smem constant byte address 0x4 - core index']
  #allocation1 [shape = 'u32[144,128]{1,0:T(1,128)}', space=vmem, size = 0x12000, scoped, tag = 'internal scratch']
  #allocation2 [shape = 'f32[4,256]{1,0:T(4,128)}', space=vmem, size = 0x1000, scoped, tag = 'scratch operand']
  #allocation3 [shape = 'f32[1,256]{1,0:T(1,128)}', space=vmem, size = 0x400, scoped, tag = 'scratch operand']
  %s0 = inlined_call_operand.hbm [shape: f32[2,4,256], index: 0, kind: input, shape index: {}]
  %s1 = inlined_call_operand.vmem [shape: f32[2,4,256], index: 1, kind: input, shape index: {}]
  %s2 = inlined_call_operand.hbm [shape: f32[4,4], index: 2, kind: input, shape index: {}]
  %s3 = inlined_call_operand.vmem [shape: f32[4,1], index: 3, kind: input, shape index: {}]
  %s4 = inlined_call_operand.vmem [shape: f32[4,4], index: 4, kind: input, shape index: {}]
  %s5 = inlined_call_operand.vmem [shape: f32[4,1], index: 5, kind: input, shape index: {}]
  %s6 = inlined_call_operand.vmem [shape: f32[4,4], index: 6, kind: input, shape index: {}]
  %s7 = inlined_call_operand.vmem [shape: f32[4,1], index: 7, kind: input, shape index: {}]
  %s8 = inlined_call_operand.hbm [shape: f32[2,4,256], index: 8, kind: output, shape index: {}]
  %s9 = sld [smem:[#allocation0]]
  $region81: #{tpu_custom_call.1} parent=0
    _
  %s11 = ssub.s32 1, %s9
  %s12 = scalar_select 0, %s11, %s9
  $region1: #{tpu_custom_call.1} parent=0
    #allocation4 [shape = 'u8[8192]{0}', space=vmem, size = 0x2000, scoped, tag = 'input window, operand 0']
    #allocation5 [shape = 's32[2]{0}', space=sflag, size = 0x8, scoped, tag = 'scoped memory for tpu_custom_call.1']
    #allocation6 [shape = 's32[2]{0}', space=sflag, size = 0x8, scoped, tag = 'scoped memory for tpu_custom_call.1']
    #allocation7 [shape = 'u8[2048]{0}', space=vmem, size = 0x800, scoped, tag = 'input window, operand 2, single buffered']
    #allocation8 [shape = 's32[1]{0}', space=sflag, size = 0x4, scoped, tag = 'scoped memory for tpu_custom_call.1']
    #allocation9 [shape = 'u8[8192]{0}', space=vmem, size = 0x2000, scoped, tag = 'output window, operand 0']
    %13 = vsyncpa [#allocation5], 0
    %s14 = scalar_lea.sflag [#allocation5], 1
    %15 = vsyncpa %s14, 0
    %16 = vsyncpa [#allocation8], 0
    %17 = vsyncpa [#allocation6], 0
    %s18 = scalar_lea.sflag [#allocation6], 1
    %19 = vsyncpa %s18, 0
    loop: start=0, step=1, limit=6
    $region2: #{tpu_custom_call.1} parent=1 // loop_pre_header
      _
    $region3: #{tpu_custom_call.1} parent=1 // loop_header
      %s21 = sphi 0, %s25
      %p22 = scmp.ge.s32.totalorder %s21, 6
      %s28 = sphi 0, %s40
      %s29 = sphi 0, %s36
      %s30 = sphi 0, %s28
      %s31 = sphi 0, %s29
      %s32 = sphi 0, %s30
      %s33 = sphi 0, %s31
      %s43 = sphi 0, %s45
      %s46 = sphi 0, %s43
      %s47 = sphi 0, %s46
      %s63 = sphi 0, %s47
      %s69 = sphi 0, %s71
      %s72 = sphi 0, %s69
      %s73 = sphi 0, %s72
      %s89 = sphi 0, %s73
      %s93 = sphi 0, %s93
      %s95 = sphi 0, %s93
      %s96 = sphi 0, %s95
      %s110 = sphi 0, %s96
      %s114 = sphi 0, %s114
      %s116 = sphi 0, %s114
      %s117 = sphi 0, %s116
      %s131 = sphi 0, %s117
      %s135 = sphi 0, %s135
      %s137 = sphi 0, %s135
      %s138 = sphi 0, %s137
      %s152 = sphi 0, %s138
      %s156 = sphi 0, %s156
      %s158 = sphi 0, %s156
      %s159 = sphi 0, %s158
      %s173 = sphi 0, %s159
      %s177 = sphi 0, %s177
      %s179 = sphi 0, %s177
      %s180 = sphi 0, %s179
      %s194 = sphi 0, %s180
      %s198 = sphi 0, %s198
      %s200 = sphi 0, %s198
      %s201 = sphi 0, %s200
      %s215 = sphi 0, %s201
      %s221 = sphi 0, %s223
      %s224 = sphi 0, %s221
      %s225 = sphi 0, %s224
      %s241 = sphi 0, %s225
    $region4: #{tpu_custom_call.1} parent=1 // loop_header_branch
      %24 = sbr.rel (%p22) target = $region8
    $region5: #{tpu_custom_call.1} parent=1 // loop_body
      %s26 = ssub.s32 %s21, 1
      %s27 = ssub.s32 %s21, 2
      %s34 = sadd.s32 1, %s29
      %p35 = scmp.ge.s32.totalorder %s34, 2
      %s36 = scalar_select %p35, 0, %s34
      %s37 = sadd.s32 1, %s28
      %s38 = scalar_select %p35, %s37, %s28
      %p39 = scmp.ge.s32.totalorder %s38, 2
      %s40 = scalar_select %p39, 0, %s38
      %s41 = ssub.s32 %s28, %s40
      %p42 = scmp.eq.s32.totalorder %s41, 0
      %s44 = sadd.s32 %s43, 1
      %s45 = scalar_select %p42, %s43, %s44
      %p48 = pneg %p42
      %p49 = scmp.eq.s32.totalorder %s21, 3
      %p50 = por %p48, %p49
      %p51 = scmp.ne.s32.totalorder %s43, %s46
      %p52 = scmp.eq.s32.totalorder %s21, 0
      %p53 = por %p51, %p52
      %p54 = scmp.ne.s32.totalorder %s43, %s46
      %p55 = scmp.eq.s32.totalorder %s26, 3
      %p56 = por %p54, %p55
      %p57 = scmp.ne.s32.totalorder %s46, %s47
      %p58 = scmp.eq.s32.totalorder %s26, 0
      %p59 = por %p57, %p58
      %p60 = scmp.ne.s32.totalorder %s46, %s47
      %p61 = scmp.eq.s32.totalorder %s27, 3
      %p62 = por %p60, %p61
      %p64 = scmp.ne.s32.totalorder %s47, %s63
      %p65 = scmp.eq.s32.totalorder %s27, 0
      %p66 = por %p64, %p65
      %s67 = ssub.s32 %s29, %s36
      %p68 = scmp.eq.s32.totalorder %s67, 0
      %s70 = sadd.s32 %s69, 1
      %s71 = scalar_select %p68, %s69, %s70
      %p74 = pneg %p68
      %p75 = scmp.eq.s32.totalorder %s21, 3
      %p76 = por %p74, %p75
      %p77 = scmp.ne.s32.totalorder %s69, %s72
      %p78 = scmp.eq.s32.totalorder %s21, 0
      %p79 = por %p77, %p78
      %p80 = scmp.ne.s32.totalorder %s69, %s72
      %p81 = scmp.eq.s32.totalorder %s26, 3
      %p82 = por %p80, %p81
      %p83 = scmp.ne.s32.totalorder %s72, %s73
      %p84 = scmp.eq.s32.totalorder %s26, 0
      %p85 = por %p83, %p84
      %p86 = scmp.ne.s32.totalorder %s72, %s73
      %p87 = scmp.eq.s32.totalorder %s27, 3
      %p88 = por %p86, %p87
      %p90 = scmp.ne.s32.totalorder %s73, %s89
      %p91 = scmp.eq.s32.totalorder %s27, 0
      %p92 = por %p90, %p91
      %s94 = sadd.s32 %s93, 1
      %p97 = scmp.eq.s32.totalorder %s21, 3
      %p98 = scmp.ne.s32.totalorder %s93, %s95
      %p99 = scmp.eq.s32.totalorder %s21, 0
      %p100 = por %p98, %p99
      %p101 = scmp.ne.s32.totalorder %s93, %s95
      %p102 = scmp.eq.s32.totalorder %s26, 3
      %p103 = por %p101, %p102
      %p104 = scmp.ne.s32.totalorder %s95, %s96
      %p105 = scmp.eq.s32.totalorder %s26, 0
      %p106 = por %p104, %p105
      %p107 = scmp.ne.s32.totalorder %s95, %s96
      %p108 = scmp.eq.s32.totalorder %s27, 3
      %p109 = por %p107, %p108
      %p111 = scmp.ne.s32.totalorder %s96, %s110
      %p112 = scmp.eq.s32.totalorder %s27, 0
      %p113 = por %p111, %p112
      %s115 = sadd.s32 %s114, 1
      %p118 = scmp.eq.s32.totalorder %s21, 3
      %p119 = scmp.ne.s32.totalorder %s114, %s116
      %p120 = scmp.eq.s32.totalorder %s21, 0
      %p121 = por %p119, %p120
      %p122 = scmp.ne.s32.totalorder %s114, %s116
      %p123 = scmp.eq.s32.totalorder %s26, 3
      %p124 = por %p122, %p123
      %p125 = scmp.ne.s32.totalorder %s116, %s117
      %p126 = scmp.eq.s32.totalorder %s26, 0
      %p127 = por %p125, %p126
      %p128 = scmp.ne.s32.totalorder %s116, %s117
      %p129 = scmp.eq.s32.totalorder %s27, 3
      %p130 = por %p128, %p129
      %p132 = scmp.ne.s32.totalorder %s117, %s131
      %p133 = scmp.eq.s32.totalorder %s27, 0
      %p134 = por %p132, %p133
      %s136 = sadd.s32 %s135, 1
      %p139 = scmp.eq.s32.totalorder %s21, 3
      %p140 = scmp.ne.s32.totalorder %s135, %s137
      %p141 = scmp.eq.s32.totalorder %s21, 0
      %p142 = por %p140, %p141
      %p143 = scmp.ne.s32.totalorder %s135, %s137
      %p144 = scmp.eq.s32.totalorder %s26, 3
      %p145 = por %p143, %p144
      %p146 = scmp.ne.s32.totalorder %s137, %s138
      %p147 = scmp.eq.s32.totalorder %s26, 0
      %p148 = por %p146, %p147
      %p149 = scmp.ne.s32.totalorder %s137, %s138
      %p150 = scmp.eq.s32.totalorder %s27, 3
      %p151 = por %p149, %p150
      %p153 = scmp.ne.s32.totalorder %s138, %s152
      %p154 = scmp.eq.s32.totalorder %s27, 0
      %p155 = por %p153, %p154
      %s157 = sadd.s32 %s156, 1
      %p160 = scmp.eq.s32.totalorder %s21, 3
      %p161 = scmp.ne.s32.totalorder %s156, %s158
      %p162 = scmp.eq.s32.totalorder %s21, 0
      %p163 = por %p161, %p162
      %p164 = scmp.ne.s32.totalorder %s156, %s158
      %p165 = scmp.eq.s32.totalorder %s26, 3
      %p166 = por %p164, %p165
      %p167 = scmp.ne.s32.totalorder %s158, %s159
      %p168 = scmp.eq.s32.totalorder %s26, 0
      %p169 = por %p167, %p168
      %p170 = scmp.ne.s32.totalorder %s158, %s159
      %p171 = scmp.eq.s32.totalorder %s27, 3
      %p172 = por %p170, %p171
      %p174 = scmp.ne.s32.totalorder %s159, %s173
      %p175 = scmp.eq.s32.totalorder %s27, 0
      %p176 = por %p174, %p175
      %s178 = sadd.s32 %s177, 1
      %p181 = scmp.eq.s32.totalorder %s21, 3
      %p182 = scmp.ne.s32.totalorder %s177, %s179
      %p183 = scmp.eq.s32.totalorder %s21, 0
      %p184 = por %p182, %p183
      %p185 = scmp.ne.s32.totalorder %s177, %s179
      %p186 = scmp.eq.s32.totalorder %s26, 3
      %p187 = por %p185, %p186
      %p188 = scmp.ne.s32.totalorder %s179, %s180
      %p189 = scmp.eq.s32.totalorder %s26, 0
      %p190 = por %p188, %p189
      %p191 = scmp.ne.s32.totalorder %s179, %s180
      %p192 = scmp.eq.s32.totalorder %s27, 3
      %p193 = por %p191, %p192
      %p195 = scmp.ne.s32.totalorder %s180, %s194
      %p196 = scmp.eq.s32.totalorder %s27, 0
      %p197 = por %p195, %p196
      %s199 = sadd.s32 %s198, 1
      %p202 = scmp.eq.s32.totalorder %s21, 3
      %p203 = scmp.ne.s32.totalorder %s198, %s200
      %p204 = scmp.eq.s32.totalorder %s21, 0
      %p205 = por %p203, %p204
      %p206 = scmp.ne.s32.totalorder %s198, %s200
      %p207 = scmp.eq.s32.totalorder %s26, 3
      %p208 = por %p206, %p207
      %p209 = scmp.ne.s32.totalorder %s200, %s201
      %p210 = scmp.eq.s32.totalorder %s26, 0
      %p211 = por %p209, %p210
      %p212 = scmp.ne.s32.totalorder %s200, %s201
      %p213 = scmp.eq.s32.totalorder %s27, 3
      %p214 = por %p212, %p213
      %p216 = scmp.ne.s32.totalorder %s201, %s215
      %p217 = scmp.eq.s32.totalorder %s27, 0
      %p218 = por %p216, %p217
      %s219 = ssub.s32 %s28, %s40
      %p220 = scmp.eq.s32.totalorder %s219, 0
      %s222 = sadd.s32 %s221, 1
      %s223 = scalar_select %p220, %s221, %s222
      %p226 = pneg %p220
      %p227 = scmp.eq.s32.totalorder %s21, 3
      %p228 = por %p226, %p227
      %p229 = scmp.ne.s32.totalorder %s221, %s224
      %p230 = scmp.eq.s32.totalorder %s21, 0
      %p231 = por %p229, %p230
      %p232 = scmp.ne.s32.totalorder %s221, %s224
      %p233 = scmp.eq.s32.totalorder %s26, 3
      %p234 = por %p232, %p233
      %p235 = scmp.ne.s32.totalorder %s224, %s225
      %p236 = scmp.eq.s32.totalorder %s26, 0
      %p237 = por %p235, %p236
      %p238 = scmp.ne.s32.totalorder %s224, %s225
      %p239 = scmp.eq.s32.totalorder %s27, 3
      %p240 = por %p238, %p239
      %p242 = scmp.ne.s32.totalorder %s225, %s241
      %p243 = scmp.eq.s32.totalorder %s27, 0
      %p244 = por %p242, %p243
      %p245 = scmp.le.s32.totalorder 1, %s21
      %p246 = scmp.lt.s32.totalorder %s21, 5
      %p247 = pnand %p245, %p246
      %p248 = pneg %p247
      // Predicated region
      $region9: #{tpu_custom_call.1} parent=5 // pred_check
        _
      $region10: #{tpu_custom_call.1} parent=5 // pred_check_branch
        %250 = sbr.rel (%p247) target = $region12
      $region11: #{tpu_custom_call.1} parent=5 // pred_region
        %s251 = ssub.s32 %s21, 1
        // Predicated region
        $region13: #{tpu_custom_call.1} parent=11 // pred_check
          %p252 = pneg %p106
        $region14: #{tpu_custom_call.1} parent=11 // pred_check_branch
          %254 = sbr.rel (%p252) target = $region16
        $region15: #{tpu_custom_call.1} parent=11 // pred_region
          %s256 = ssub.s32 64, 64
          %257 = vsyncadd [#allocation8], %s256
          %s259 = sshll.u32 [#allocation7], 4
          %s260 = int_to_ptr.vmem [resolvable:$true] %s259
          %262 = dma.hbm_to_vmem [thread:$0]  %s2, 64, %s260, [#allocation8]
        $region16: #{tpu_custom_call.1} parent=11 // pred_fallthru
          _
        // Predicated region
        $region17: #{tpu_custom_call.1} parent=11 // pred_check
          %p263 = pneg %p127
        $region18: #{tpu_custom_call.1} parent=11 // pred_check_branch
          %265 = sbr.rel (%p263) target = $region20
        $region19: #{tpu_custom_call.1} parent=11 // pred_region
          _
        $region20: #{tpu_custom_call.1} parent=11 // pred_fallthru
          _
        // Predicated region
        $region21: #{tpu_custom_call.1} parent=11 // pred_check
          %p266 = pneg %p148
        $region22: #{tpu_custom_call.1} parent=11 // pred_check_branch
          %268 = sbr.rel (%p266) target = $region24
        $region23: #{tpu_custom_call.1} parent=11 // pred_region
          _
        $region24: #{tpu_custom_call.1} parent=11 // pred_fallthru
          _
        // Predicated region
        $region25: #{tpu_custom_call.1} parent=11 // pred_check
          %p269 = pneg %p169
        $region26: #{tpu_custom_call.1} parent=11 // pred_check_branch
          %271 = sbr.rel (%p269) target = $region28
        $region27: #{tpu_custom_call.1} parent=11 // pred_region
          _
        $region28: #{tpu_custom_call.1} parent=11 // pred_fallthru
          _
        // Predicated region
        $region29: #{tpu_custom_call.1} parent=11 // pred_check
          %p272 = pneg %p190
        $region30: #{tpu_custom_call.1} parent=11 // pred_check_branch
          %274 = sbr.rel (%p272) target = $region32
        $region31: #{tpu_custom_call.1} parent=11 // pred_region
          _
        $region32: #{tpu_custom_call.1} parent=11 // pred_fallthru
          _
        // Predicated region
        $region33: #{tpu_custom_call.1} parent=11 // pred_check
          %p275 = pneg %p211
        $region34: #{tpu_custom_call.1} parent=11 // pred_check_branch
          %277 = sbr.rel (%p275) target = $region36
        $region35: #{tpu_custom_call.1} parent=11 // pred_region
          _
        $region36: #{tpu_custom_call.1} parent=11 // pred_fallthru
          _
      $region12: #{tpu_custom_call.1} parent=5 // pred_fallthru
        _
      %p278 = scmp.lt.s32.totalorder %s21, 4
      // Predicated region
      $region37: #{tpu_custom_call.1} parent=5 // pred_check
        %p279 = pneg %p278
      $region38: #{tpu_custom_call.1} parent=5 // pred_check_branch
        %281 = sbr.rel (%p279) target = $region40
      $region39: #{tpu_custom_call.1} parent=5 // pred_region
        // Predicated region
        $region41: #{tpu_custom_call.1} parent=39 // pred_check
          %p282 = pneg %p53
        $region42: #{tpu_custom_call.1} parent=39 // pred_check_branch
          %284 = sbr.rel (%p282) target = $region44
        $region43: #{tpu_custom_call.1} parent=39 // pred_region
          %s285 = sand.u32 %s43, 1
          %s286 = scalar_lea.sflag [#allocation5], %s285
          %s287 = sand.u32 %s43, 1
          %s288 = smul.addr %s287, 8
          %s289 = scalar_lea.vmem [#allocation4], %s288
          %s291 = ssub.s32 128, 128
          %292 = vsyncadd %s286, %s291
          %s293 = smul.addr %s28, 2
          %s294 = smul.addr %s293, 64
          %s295 = scalar_lea.hbm %s0, %s294
          %s297 = sshll.u32 %s289, 4
          %s298 = int_to_ptr.vmem [resolvable:$true] %s297
          %300 = dma.hbm_to_vmem [thread:$0]  %s295, 128, %s298, %s286
        $region44: #{tpu_custom_call.1} parent=39 // pred_fallthru
          _
        // Predicated region
        $region45: #{tpu_custom_call.1} parent=39 // pred_check
          %p301 = pneg %p79
        $region46: #{tpu_custom_call.1} parent=39 // pred_check_branch
          %303 = sbr.rel (%p301) target = $region48
        $region47: #{tpu_custom_call.1} parent=39 // pred_region
          %p304 = scmp.lt.s32.totalorder %s29, 1
          %s305 = scalar_select %p304, %s29, 1
          %s306 = smul.addr %s305, 2
          %s307 = smul.addr %s306, 4
          %s308 = scalar_lea.vmem %s1, %s307
        $region48: #{tpu_custom_call.1} parent=39 // pred_fallthru
          _
      $region40: #{tpu_custom_call.1} parent=5 // pred_fallthru
        _
      %p309 = scmp.le.s32.totalorder 1, %s21
      %p310 = scmp.lt.s32.totalorder %s21, 5
      %p311 = pnand %p309, %p310
      %p312 = pneg %p311
      // Predicated region
      $region49: #{tpu_custom_call.1} parent=5 // pred_check
        _
      $region50: #{tpu_custom_call.1} parent=5 // pred_check_branch
        %314 = sbr.rel (%p311) target = $region52
      $region51: #{tpu_custom_call.1} parent=5 // pred_region
        %s315 = ssub.s32 %s21, 1
        %s316 = sand.u32 %s46, 1
        %s317 = scalar_lea.sflag [#allocation5], %s316
        %s318 = sand.u32 %s46, 1
        %s319 = smul.addr %s318, 8
        %s320 = scalar_lea.vmem [#allocation4], %s319
        // Predicated region
        $region53: #{tpu_custom_call.1} parent=51 // pred_check
          %p321 = pneg %p59
        $region54: #{tpu_custom_call.1} parent=51 // pred_check_branch
          %323 = sbr.rel (%p321) target = $region56
        $region55: #{tpu_custom_call.1} parent=51 // pred_region
          %324 = dma.done %s317, 128
        $region56: #{tpu_custom_call.1} parent=51 // pred_fallthru
          _
        // Predicated region
        $region57: #{tpu_custom_call.1} parent=51 // pred_check
          %p325 = pneg %p106
        $region58: #{tpu_custom_call.1} parent=51 // pred_check_branch
          %327 = sbr.rel (%p325) target = $region60
        $region59: #{tpu_custom_call.1} parent=51 // pred_region
          %328 = dma.done [#allocation8], 64
        $region60: #{tpu_custom_call.1} parent=51 // pred_fallthru
          _
        %s329 = sand.u32 %s46, 1
        %s330 = scalar_lea.sflag [#allocation5], %s329
        %s331 = sand.u32 %s46, 1
        %s332 = smul.addr %s331, 8
        %s333 = scalar_lea.vmem [#allocation4], %s332
        %p334 = pneg %p59
        %p335 = pneg %p56
        %p336 = scmp.lt.s32.totalorder %s31, 1
        %s337 = scalar_select %p336, %s31, 1
        %s338 = smul.addr %s337, 2
        %s339 = smul.addr %s338, 4
        %s340 = scalar_lea.vmem %s1, %s339
        %p341 = pneg %p85
        %p342 = pneg %p82
        %p343 = pneg %p106
        %p344 = pneg %p103
        %p345 = pneg %p127
        %p346 = pneg %p124
        %p347 = pneg %p148
        %p348 = pneg %p145
        %p349 = pneg %p169
        %p350 = pneg %p166
        %p351 = pneg %p190
        %p352 = pneg %p187
        %p353 = pneg %p211
        %p354 = pneg %p208
        %p355 = pneg %p237
        %p356 = pneg %p234
        %s357 = sand.u32 %s224, 1
        %s358 = scalar_lea.sflag [#allocation6], %s357
        %s359 = sand.u32 %s224, 1
        %s360 = smul.addr %s359, 8
        %s361 = scalar_lea.vmem [#allocation9], %s360
        %p362 = scmp.lt.s32.totalorder %s31, 1
        %s363 = scalar_select %p362, %s31, 1
        %s364 = smul.addr %s363, 2
        %s365 = smul.addr %s364, 4
        %s366 = scalar_lea.vmem %s1, %s365
        %p367 = scmp.eq.s32.totalorder %s31, 0
        // Predicated region
        $region61: #{tpu_custom_call.1} parent=51 // pred_check
          %p368 = pneg %p367
        $region62: #{tpu_custom_call.1} parent=51 // pred_check_branch
          %370 = sbr.rel (%p368) target = $region64
        $region63: #{tpu_custom_call.1} parent=51 // pred_region
          %v371 = vld [vmem:[#allocation7] sm:$0xf]
          %v372 = vld [vmem:[%s320] sm:$0xff]
          %v373 = vld [vmem:[%s3] sm:$0xf]
          %375 = vset.pattern.permute.xlu0 0
          %376 = vperm.xlu0 %375, %v373
          %v377 = vpop.permute.xlu0 %376
          %v380 = vcombine.high %v372, %v372
          %vm381 = vcmask 31744
          %v383 = vsel %vm381, %v371, 0
          %vm385 = vcmask 1043456
          %v386 = vsel %vm385, %v372, 0
          %v388 = vsel %vm385, %v380, 0
          %390 = vmatprep.subr.mxu0 0.0
          %391 = vmatpush1.msra.mxu0 0.0
          %392 = vmatprep.subr.mxu0 0.0
          %393 = vmatpush1.msra.mxu0 0.0
          %394 = vmatprep.subr.mxu0 0.0
          %395 = vmatpush1.msra.mxu0 0.0
          %396 = vmatprep.subr.mxu0 0.0
          %397 = vmatpush1.msra.mxu0 0.0
          %398 = vmatprep.subr.mxu0 0.0
          %399 = vmatpush1.msra.mxu0 0.0
          %400 = vmatprep.subr.mxu0 0.0
          %401 = vmatpush1.msra.mxu0 0.0
          %402 = vmatprep.subr.mxu0 0.0
          %403 = vmatpush1.msra.mxu0 0.0
          %404 = vmatprep.subr.mxu0 0.0
          %405 = vmatpush1.msra.mxu0 0.0
          %406 = vmatprep.subr.mxu0 0.0
          %407 = vmatpush1.msra.mxu0 0.0
          %408 = vmatprep.subr.mxu0 0.0
          %409 = vmatpush1.msra.mxu0 0.0
          %410 = vmatprep.subr.mxu0 0.0
          %411 = vmatpush1.msra.mxu0 0.0
          %412 = vmatprep.subr.mxu0 0.0
          %413 = vmatpush1.msra.mxu0 0.0
          %414 = vmatprep.subr.mxu0 0.0
          %415 = vmatpush1.msra.mxu0 0.0
          %416 = vmatprep.subr.mxu0 0.0
          %417 = vmatpush1.msra.mxu0 0.0
          %418 = vmatprep.subr.mxu0 0.0
          %419 = vmatpush1.msra.mxu0 0.0
          %420 = vmatprep.subr.mxu0 %v388
          %421 = vmatpush1.msra.mxu0 %v386
          %422 = vmatprep.subr.mxu0 0.0
          %423 = vmatpush2.msra.mxu0 0.0
          %424 = vmatprep.subr.mxu0 0.0
          %425 = vmatpush2.msra.mxu0 0.0
          %426 = vmatprep.subr.mxu0 0.0
          %427 = vmatpush2.msra.mxu0 0.0
          %428 = vmatprep.subr.mxu0 0.0
          %429 = vmatpush2.msra.mxu0 0.0
          %430 = vmatprep.subr.mxu0 0.0
          %431 = vmatpush2.msra.mxu0 0.0
          %432 = vmatprep.subr.mxu0 0.0
          %433 = vmatpush2.msra.mxu0 0.0
          %434 = vmatprep.subr.mxu0 0.0
          %435 = vmatpush2.msra.mxu0 0.0
          %436 = vmatprep.subr.mxu0 0.0
          %437 = vmatpush2.msra.mxu0 0.0
          %438 = vmatprep.subr.mxu0 0.0
          %439 = vmatpush2.msra.mxu0 0.0
          %440 = vmatprep.subr.mxu0 0.0
          %441 = vmatpush2.msra.mxu0 0.0
          %442 = vmatprep.subr.mxu0 0.0
          %443 = vmatpush2.msra.mxu0 0.0
          %444 = vmatprep.subr.mxu0 0.0
          %445 = vmatpush2.msra.mxu0 0.0
          %446 = vmatprep.subr.mxu0 0.0
          %447 = vmatpush2.msra.mxu0 0.0
          %448 = vmatprep.subr.mxu0 0.0
          %449 = vmatpush2.msra.mxu0 0.0
          %450 = vmatprep.subr.mxu0 0.0
          %451 = vmatpush2.msra.mxu0 0.0
          %452 = vmatprep.subr.mxu0 0.0
          %453 = vmatpush2.msra.mxu0 0.0
          %454 = vmatprep.mubr.f32.mxu0 0.0
          %455 = vmatmul.mubr.f32.gmra.mxu0 %v383
          %v456 = vpop.f32.mrf.mxu0
          %v457 = vadd.f32 %v377, %v456
          %v458 = vpop.f32.mrf.mxu0
          %v459 = vadd.f32 %v377, %v458
          %460 = vdwg.mxu0
          %v463 = vcombine.low %v457, %v459
          %465 = vst [vmem:[#allocation2] sm:$0xff] %v463
          %v466 = vlaneseq
          %vm467 = vcmp.ge.s32.totalorder %v466, 0
          %vm468 = vcmp.lt.s32.totalorder %v466, 256
          %vm469 = vmand %vm467, %vm468
          %470 = vst.msk [vmem:[#allocation3] sm:$0x3] %vm469, 0.0
        $region64: #{tpu_custom_call.1} parent=51 // pred_fallthru
          _
        %v471 = vld [vmem:[#allocation2] sm:$0xff]
        %v472 = vld [vmem:[%s366] sm:$0xff]
        %v473 = vld [vmem:[%s4] sm:$0xf]
        %v474 = vld [vmem:[%s5] sm:$0xf]
        %476 = vset.pattern.permute.xlu0 0
        %477 = vperm.xlu0 %476, %v474
        %v478 = vpop.permute.xlu0 %477
        %vm480 = vcmask 31744
        %v482 = vsel %vm480, %v473, 0
        %vm484 = vcmask 1043456
        %v486 = vsel %vm484, %v472, 0
        %488 = vmatprep.subr.mxu0 0.0
        %489 = vmatpush1.msra.mxu0 0.0
        %490 = vmatprep.subr.mxu0 0.0
        %491 = vmatpush1.msra.mxu0 0.0
        %492 = vmatprep.subr.mxu0 0.0
        %493 = vmatpush1.msra.mxu0 0.0
        %494 = vmatprep.subr.mxu0 0.0
        %495 = vmatpush1.msra.mxu0 0.0
        %496 = vmatprep.subr.mxu0 0.0
        %497 = vmatpush1.msra.mxu0 0.0
        %498 = vmatprep.subr.mxu0 0.0
        %499 = vmatpush1.msra.mxu0 0.0
        %500 = vmatprep.subr.mxu0 0.0
        %501 = vmatpush1.msra.mxu0 0.0
        %502 = vmatprep.subr.mxu0 0.0
        %503 = vmatpush1.msra.mxu0 0.0
        %504 = vmatprep.subr.mxu0 0.0
        %505 = vmatpush1.msra.mxu0 0.0
        %506 = vmatprep.subr.mxu0 0.0
        %507 = vmatpush1.msra.mxu0 0.0
        %508 = vmatprep.subr.mxu0 0.0
        %509 = vmatpush1.msra.mxu0 0.0
        %510 = vmatprep.subr.mxu0 0.0
        %511 = vmatpush1.msra.mxu0 0.0
        %512 = vmatprep.subr.mxu0 0.0
        %513 = vmatpush1.msra.mxu0 0.0
        %514 = vmatprep.subr.mxu0 0.0
        %515 = vmatpush1.msra.mxu0 0.0
        %516 = vmatprep.subr.mxu0 0.0
        %517 = vmatpush1.msra.mxu0 0.0
        %518 = vmatprep.subr.mxu0 0.0
        %519 = vmatpush1.msra.mxu0 %v486
        %520 = vmatprep.subr.mxu0 0.0
        %521 = vmatpush2.msra.mxu0 0.0
        %522 = vmatprep.subr.mxu0 0.0
        %523 = vmatpush2.msra.mxu0 0.0
        %524 = vmatprep.subr.mxu0 0.0
        %525 = vmatpush2.msra.mxu0 0.0
        %526 = vmatprep.subr.mxu0 0.0
        %527 = vmatpush2.msra.mxu0 0.0
        %528 = vmatprep.subr.mxu0 0.0
        %529 = vmatpush2.msra.mxu0 0.0
        %530 = vmatprep.subr.mxu0 0.0
        %531 = vmatpush2.msra.mxu0 0.0
        %532 = vmatprep.subr.mxu0 0.0
        %533 = vmatpush2.msra.mxu0 0.0
        %534 = vmatprep.subr.mxu0 0.0
        %535 = vmatpush2.msra.mxu0 0.0
        %536 = vmatprep.subr.mxu0 0.0
        %537 = vmatpush2.msra.mxu0 0.0
        %538 = vmatprep.subr.mxu0 0.0
        %539 = vmatpush2.msra.mxu0 0.0
        %540 = vmatprep.subr.mxu0 0.0
        %541 = vmatpush2.msra.mxu0 0.0
        %542 = vmatprep.subr.mxu0 0.0
        %543 = vmatpush2.msra.mxu0 0.0
        %544 = vmatprep.subr.mxu0 0.0
        %545 = vmatpush2.msra.mxu0 0.0
        %546 = vmatprep.subr.mxu0 0.0
        %547 = vmatpush2.msra.mxu0 0.0
        %548 = vmatprep.subr.mxu0 0.0
        %549 = vmatpush2.msra.mxu0 0.0
        %550 = vmatprep.subr.mxu0 0.0
        %551 = vmatpush2.msra.mxu0 0.0
        %552 = vmatprep.mubr.f32.mxu0 0.0
        %553 = vmatmul.mubr.f32.gmra.mxu0 %v482
        %v554 = vpop.f32.mrf.mxu0
        %v555 = vadd.f32 %v478, %v554
        %v556 = vpop.f32.mrf.mxu0
        %557 = vdwg.mxu0
        %558 = vxpose.xlu0.b32.start [1/16] %v555, 128
        %559 = vxpose.xlu0.b32.cont [2/16] 0.0, 128
        %560 = vxpose.xlu0.b32.cont [3/16] 0.0, 128
        %561 = vxpose.xlu0.b32.cont [4/16] 0.0, 128
        %562 = vxpose.xlu0.b32.cont [5/16] 0.0, 128
        %563 = vxpose.xlu0.b32.cont [6/16] 0.0, 128
        %564 = vxpose.xlu0.b32.cont [7/16] 0.0, 128
        %565 = vxpose.xlu0.b32.cont [8/16] 0.0, 128
        %566 = vxpose.xlu0.b32.cont [9/16] 0.0, 128
        %567 = vxpose.xlu0.b32.cont [10/16] 0.0, 128
        %568 = vxpose.xlu0.b32.cont [11/16] 0.0, 128
        %569 = vxpose.xlu0.b32.cont [12/16] 0.0, 128
        %570 = vxpose.xlu0.b32.cont [13/16] 0.0, 128
        %571 = vxpose.xlu0.b32.cont [14/16] 0.0, 128
        %572 = vxpose.xlu0.b32.cont [15/16] 0.0, 128
        %573 = vxpose.xlu0.b32.end [16/16] 0.0, 128
        %v574 = vpop.trf.xlu0
        %v575 = vpop.trf.xlu0
        %v576 = vpop.trf.xlu0
        %v577 = vpop.trf.xlu0
        %v578 = vpop.trf.xlu0
        %v579 = vpop.trf.xlu0
        %v580 = vpop.trf.xlu0
        %v581 = vpop.trf.xlu0
        %v582 = vpop.trf.xlu0
        %v583 = vpop.trf.xlu0
        %v584 = vpop.trf.xlu0
        %v585 = vpop.trf.xlu0
        %v586 = vpop.trf.xlu0
        %v587 = vpop.trf.xlu0
        %v588 = vpop.trf.xlu0
        %v589 = vpop.trf.xlu0
        %v591 = vcombine.high %v471, %v471
        %v593 = vsel %vm480, %v574, 0
        %v596 = vsel %vm480, %v575, 0
        %v599 = vsel %vm480, %v576, 0
        %v602 = vsel %vm480, %v577, 0
        %v605 = vsel %vm480, %v578, 0
        %v608 = vsel %vm480, %v579, 0
        %v611 = vsel %vm480, %v580, 0
        %v614 = vsel %vm480, %v581, 0
        %v617 = vsel %vm480, %v582, 0
        %v620 = vsel %vm480, %v583, 0
        %v623 = vsel %vm480, %v584, 0
        %v626 = vsel %vm480, %v585, 0
        %v629 = vsel %vm480, %v586, 0
        %v632 = vsel %vm480, %v587, 0
        %v635 = vsel %vm480, %v588, 0
        %v638 = vsel %vm480, %v589, 0
        %v640 = vsel %vm484, %v471, 0
        %v642 = vsel %vm484, %v591, 0
        %644 = vmatprep.subr.mxu0 0.0
        %645 = vmatpush1.msra.mxu0 0.0
        %646 = vmatprep.subr.mxu0 0.0
        %647 = vmatpush1.msra.mxu0 0.0
        %648 = vmatprep.subr.mxu0 0.0
        %649 = vmatpush1.msra.mxu0 0.0
        %650 = vmatprep.subr.mxu0 0.0
        %651 = vmatpush1.msra.mxu0 0.0
        %652 = vmatprep.subr.mxu0 0.0
        %653 = vmatpush1.msra.mxu0 0.0
        %654 = vmatprep.subr.mxu0 0.0
        %655 = vmatpush1.msra.mxu0 0.0
        %656 = vmatprep.subr.mxu0 0.0
        %657 = vmatpush1.msra.mxu0 0.0
        %658 = vmatprep.subr.mxu0 0.0
        %659 = vmatpush1.msra.mxu0 0.0
        %660 = vmatprep.subr.mxu0 0.0
        %661 = vmatpush1.msra.mxu0 0.0
        %662 = vmatprep.subr.mxu0 0.0
        %663 = vmatpush1.msra.mxu0 0.0
        %664 = vmatprep.subr.mxu0 0.0
        %665 = vmatpush1.msra.mxu0 0.0
        %666 = vmatprep.subr.mxu0 0.0
        %667 = vmatpush1.msra.mxu0 0.0
        %668 = vmatprep.subr.mxu0 0.0
        %669 = vmatpush1.msra.mxu0 0.0
        %670 = vmatprep.subr.mxu0 0.0
        %671 = vmatpush1.msra.mxu0 0.0
        %672 = vmatprep.subr.mxu0 0.0
        %673 = vmatpush1.msra.mxu0 0.0
        %674 = vmatprep.subr.mxu0 %v642
        %675 = vmatpush1.msra.mxu0 %v640
        %676 = vmatprep.subr.mxu0 0.0
        %677 = vmatpush2.msra.mxu0 0.0
        %678 = vmatprep.subr.mxu0 0.0
        %679 = vmatpush2.msra.mxu0 0.0
        %680 = vmatprep.subr.mxu0 0.0
        %681 = vmatpush2.msra.mxu0 0.0
        %682 = vmatprep.subr.mxu0 0.0
        %683 = vmatpush2.msra.mxu0 0.0
        %684 = vmatprep.subr.mxu0 0.0
        %685 = vmatpush2.msra.mxu0 0.0
        %686 = vmatprep.subr.mxu0 0.0
        %687 = vmatpush2.msra.mxu0 0.0
        %688 = vmatprep.subr.mxu0 0.0
        %689 = vmatpush2.msra.mxu0 0.0
        %690 = vmatprep.subr.mxu0 0.0
        %691 = vmatpush2.msra.mxu0 0.0
        %692 = vmatprep.subr.mxu0 0.0
        %693 = vmatpush2.msra.mxu0 0.0
        %694 = vmatprep.subr.mxu0 0.0
        %695 = vmatpush2.msra.mxu0 0.0
        %696 = vmatprep.subr.mxu0 0.0
        %697 = vmatpush2.msra.mxu0 0.0
        %698 = vmatprep.subr.mxu0 0.0
        %699 = vmatpush2.msra.mxu0 0.0
        %700 = vmatprep.subr.mxu0 0.0
        %701 = vmatpush2.msra.mxu0 0.0
        %702 = vmatprep.subr.mxu0 0.0
        %703 = vmatpush2.msra.mxu0 0.0
        %704 = vmatprep.subr.mxu0 0.0
        %705 = vmatpush2.msra.mxu0 0.0
        %706 = vmatprep.subr.mxu0 0.0
        %707 = vmatpush2.msra.mxu0 0.0
        %708 = vmatprep.mubr.f32.mxu0 0.0
        %709 = vmatmul.mubr.f32.gmra.mxu0 %v593
        %v710 = vpop.f32.mrf.mxu0
        %v711 = vadd.f32 0.0, %v710
        %v712 = vpop.f32.mrf.mxu0
        %v713 = vadd.f32 0.0, %v712
        %714 = vmatprep.mubr.f32.mxu0 0.0
        %715 = vmatmul.mubr.f32.gmra.mxu0 %v596
        %v716 = vpop.f32.mrf.mxu0
        %v717 = vadd.f32 0.0, %v716
        %v718 = vpop.f32.mrf.mxu0
        %v719 = vadd.f32 0.0, %v718
        %720 = vmatprep.mubr.f32.mxu0 0.0
        %721 = vmatmul.mubr.f32.gmra.mxu0 %v599
        %v722 = vpop.f32.mrf.mxu0
        %v723 = vadd.f32 0.0, %v722
        %v724 = vpop.f32.mrf.mxu0
        %v725 = vadd.f32 0.0, %v724
        %726 = vmatprep.mubr.f32.mxu0 0.0
        %727 = vmatmul.mubr.f32.gmra.mxu0 %v602
        %v728 = vpop.f32.mrf.mxu0
        %v729 = vadd.f32 0.0, %v728
        %v730 = vpop.f32.mrf.mxu0
        %v731 = vadd.f32 0.0, %v730
        %732 = vmatprep.mubr.f32.mxu0 0.0
        %733 = vmatmul.mubr.f32.gmra.mxu0 %v605
        %v734 = vpop.f32.mrf.mxu0
        %v735 = vadd.f32 0.0, %v734
        %v736 = vpop.f32.mrf.mxu0
        %v737 = vadd.f32 0.0, %v736
        %738 = vmatprep.mubr.f32.mxu0 0.0
        %739 = vmatmul.mubr.f32.gmra.mxu0 %v608
        %v740 = vpop.f32.mrf.mxu0
        %v741 = vadd.f32 0.0, %v740
        %v742 = vpop.f32.mrf.mxu0
        %v743 = vadd.f32 0.0, %v742
        %744 = vmatprep.mubr.f32.mxu0 0.0
        %745 = vmatmul.mubr.f32.gmra.mxu0 %v611
        %v746 = vpop.f32.mrf.mxu0
        %v747 = vadd.f32 0.0, %v746
        %v748 = vpop.f32.mrf.mxu0
        %v749 = vadd.f32 0.0, %v748
        %750 = vmatprep.mubr.f32.mxu0 0.0
        %751 = vmatmul.mubr.f32.gmra.mxu0 %v614
        %v752 = vpop.f32.mrf.mxu0
        %v753 = vadd.f32 0.0, %v752
        %v754 = vpop.f32.mrf.mxu0
        %v755 = vadd.f32 0.0, %v754
        %756 = vmatprep.mubr.f32.mxu0 0.0
        %757 = vmatmul.mubr.f32.gmra.mxu0 %v617
        %v758 = vpop.f32.mrf.mxu0
        %v759 = vadd.f32 0.0, %v758
        %v760 = vpop.f32.mrf.mxu0
        %v761 = vadd.f32 0.0, %v760
        %762 = vmatprep.mubr.f32.mxu0 0.0
        %763 = vmatmul.mubr.f32.gmra.mxu0 %v620
        %v764 = vpop.f32.mrf.mxu0
        %v765 = vadd.f32 0.0, %v764
        %v766 = vpop.f32.mrf.mxu0
        %v767 = vadd.f32 0.0, %v766
        %768 = vmatprep.mubr.f32.mxu0 0.0
        %769 = vmatmul.mubr.f32.gmra.mxu0 %v623
        %v770 = vpop.f32.mrf.mxu0
        %v771 = vadd.f32 0.0, %v770
        %v772 = vpop.f32.mrf.mxu0
        %v773 = vadd.f32 0.0, %v772
        %774 = vmatprep.mubr.f32.mxu0 0.0
        %775 = vmatmul.mubr.f32.gmra.mxu0 %v626
        %v776 = vpop.f32.mrf.mxu0
        %v777 = vadd.f32 0.0, %v776
        %v778 = vpop.f32.mrf.mxu0
        %v779 = vadd.f32 0.0, %v778
        %780 = vmatprep.mubr.f32.mxu0 0.0
        %781 = vmatmul.mubr.f32.gmra.mxu0 %v629
        %v782 = vpop.f32.mrf.mxu0
        %v783 = vadd.f32 0.0, %v782
        %v784 = vpop.f32.mrf.mxu0
        %v785 = vadd.f32 0.0, %v784
        %786 = vmatprep.mubr.f32.mxu0 0.0
        %787 = vmatmul.mubr.f32.gmra.mxu0 %v632
        %v788 = vpop.f32.mrf.mxu0
        %v789 = vadd.f32 0.0, %v788
        %v790 = vpop.f32.mrf.mxu0
        %v791 = vadd.f32 0.0, %v790
        %792 = vmatprep.mubr.f32.mxu0 0.0
        %793 = vmatmul.mubr.f32.gmra.mxu0 %v635
        %v794 = vpop.f32.mrf.mxu0
        %v795 = vadd.f32 0.0, %v794
        %v796 = vpop.f32.mrf.mxu0
        %v797 = vadd.f32 0.0, %v796
        %798 = vmatprep.mubr.f32.mxu0 0.0
        %799 = vmatmul.mubr.f32.gmra.mxu0 %v638
        %v800 = vpop.f32.mrf.mxu0
        %v801 = vadd.f32 0.0, %v800
        %v802 = vpop.f32.mrf.mxu0
        %v803 = vadd.f32 0.0, %v802
        %804 = vdwg.mxu0
        %v805 = vmax.f32 %v711, %v723
        %v806 = vmax.f32 %v717, %v729
        %v807 = vmax.f32 %v805, %v735
        %v808 = vmax.f32 %v806, %v741
        %v809 = vmax.f32 %v807, %v747
        %v810 = vmax.f32 %v808, %v753
        %v811 = vmax.f32 %v809, %v759
        %v812 = vmax.f32 %v810, %v765
        %v813 = vmax.f32 %v811, %v771
        %v814 = vmax.f32 %v812, %v777
        %v815 = vmax.f32 %v813, %v783
        %v816 = vmax.f32 %v814, %v789
        %v817 = vmax.f32 %v815, %v795
        %v818 = vmax.f32 %v816, %v801
        %v819 = vmax.f32 %v817, %v818
        %v820 = vrot.slane %v819, 4
        %v821 = vmax.f32 %v819, %v820
        %v822 = vrot.slane %v821, 2
        %v823 = vmax.f32 %v821, %v822
        %v824 = vrot.slane %v823, 1
        %v825 = vmax.f32 %v823, %v824
        %v826 = vmax.f32 %v713, %v725
        %v827 = vmax.f32 %v719, %v731
        %v828 = vmax.f32 %v826, %v737
        %v829 = vmax.f32 %v827, %v743
        %v830 = vmax.f32 %v828, %v749
        %v831 = vmax.f32 %v829, %v755
        %v832 = vmax.f32 %v830, %v761
        %v833 = vmax.f32 %v831, %v767
        %v834 = vmax.f32 %v832, %v773
        %v835 = vmax.f32 %v833, %v779
        %v836 = vmax.f32 %v834, %v785
        %v837 = vmax.f32 %v835, %v791
        %v838 = vmax.f32 %v836, %v797
        %v839 = vmax.f32 %v837, %v803
        %v840 = vmax.f32 %v838, %v839
        %v841 = vrot.slane %v840, 4
        %v842 = vmax.f32 %v840, %v841
        %v843 = vrot.slane %v842, 2
        %v844 = vmax.f32 %v842, %v843
        %v845 = vrot.slane %v844, 1
        %v846 = vmax.f32 %v844, %v845
        %v847 = vcombine.high %v472, %v472
        %v848 = vsel %vm484, %v847, 0
        %850 = vmatprep.subr.mxu0 0.0
        %851 = vmatpush1.msra.mxu0 0.0
        %852 = vmatprep.subr.mxu0 0.0
        %853 = vmatpush1.msra.mxu0 0.0
        %854 = vmatprep.subr.mxu0 0.0
        %855 = vmatpush1.msra.mxu0 0.0
        %856 = vmatprep.subr.mxu0 0.0
        %857 = vmatpush1.msra.mxu0 0.0
        %858 = vmatprep.subr.mxu0 0.0
        %859 = vmatpush1.msra.mxu0 0.0
        %860 = vmatprep.subr.mxu0 0.0
        %861 = vmatpush1.msra.mxu0 0.0
        %862 = vmatprep.subr.mxu0 0.0
        %863 = vmatpush1.msra.mxu0 0.0
        %864 = vmatprep.subr.mxu0 0.0
        %865 = vmatpush1.msra.mxu0 0.0
        %866 = vmatprep.subr.mxu0 0.0
        %867 = vmatpush1.msra.mxu0 0.0
        %868 = vmatprep.subr.mxu0 0.0
        %869 = vmatpush1.msra.mxu0 0.0
        %870 = vmatprep.subr.mxu0 0.0
        %871 = vmatpush1.msra.mxu0 0.0
        %872 = vmatprep.subr.mxu0 0.0
        %873 = vmatpush1.msra.mxu0 0.0
        %874 = vmatprep.subr.mxu0 0.0
        %875 = vmatpush1.msra.mxu0 0.0
        %876 = vmatprep.subr.mxu0 0.0
        %877 = vmatpush1.msra.mxu0 0.0
        %878 = vmatprep.subr.mxu0 0.0
        %879 = vmatpush1.msra.mxu0 0.0
        %880 = vmatprep.subr.mxu0 0.0
        %881 = vmatpush1.msra.mxu0 %v848
        %882 = vmatprep.subr.mxu0 0.0
        %883 = vmatpush2.msra.mxu0 0.0
        %884 = vmatprep.subr.mxu0 0.0
        %885 = vmatpush2.msra.mxu0 0.0
        %886 = vmatprep.subr.mxu0 0.0
        %887 = vmatpush2.msra.mxu0 0.0
        %888 = vmatprep.subr.mxu0 0.0
        %889 = vmatpush2.msra.mxu0 0.0
        %890 = vmatprep.subr.mxu0 0.0
        %891 = vmatpush2.msra.mxu0 0.0
        %892 = vmatprep.subr.mxu0 0.0
        %893 = vmatpush2.msra.mxu0 0.0
        %894 = vmatprep.subr.mxu0 0.0
        %895 = vmatpush2.msra.mxu0 0.0
        %896 = vmatprep.subr.mxu0 0.0
        %897 = vmatpush2.msra.mxu0 0.0
        %898 = vmatprep.subr.mxu0 0.0
        %899 = vmatpush2.msra.mxu0 0.0
        %900 = vmatprep.subr.mxu0 0.0
        %901 = vmatpush2.msra.mxu0 0.0
        %902 = vmatprep.subr.mxu0 0.0
        %903 = vmatpush2.msra.mxu0 0.0
        %904 = vmatprep.subr.mxu0 0.0
        %905 = vmatpush2.msra.mxu0 0.0
        %906 = vmatprep.subr.mxu0 0.0
        %907 = vmatpush2.msra.mxu0 0.0
        %908 = vmatprep.subr.mxu0 0.0
        %909 = vmatpush2.msra.mxu0 0.0
        %910 = vmatprep.subr.mxu0 0.0
        %911 = vmatpush2.msra.mxu0 0.0
        %912 = vmatprep.subr.mxu0 0.0
        %913 = vmatpush2.msra.mxu0 0.0
        %914 = vmatprep.mubr.f32.mxu0 0.0
        %915 = vmatmul.mubr.f32.gmra.mxu0 %v482
        %v916 = vpop.f32.mrf.mxu0
        %v917 = vadd.f32 %v478, %v916
        %v918 = vpop.f32.mrf.mxu0
        %919 = vdwg.mxu0
        %920 = vxpose.xlu0.b32.start [1/16] %v917, 128
        %921 = vxpose.xlu0.b32.cont [2/16] 0.0, 128
        %922 = vxpose.xlu0.b32.cont [3/16] 0.0, 128
        %923 = vxpose.xlu0.b32.cont [4/16] 0.0, 128
        %924 = vxpose.xlu0.b32.cont [5/16] 0.0, 128
        %925 = vxpose.xlu0.b32.cont [6/16] 0.0, 128
        %926 = vxpose.xlu0.b32.cont [7/16] 0.0, 128
        %927 = vxpose.xlu0.b32.cont [8/16] 0.0, 128
        %928 = vxpose.xlu0.b32.cont [9/16] 0.0, 128
        %929 = vxpose.xlu0.b32.cont [10/16] 0.0, 128
        %930 = vxpose.xlu0.b32.cont [11/16] 0.0, 128
        %931 = vxpose.xlu0.b32.cont [12/16] 0.0, 128
        %932 = vxpose.xlu0.b32.cont [13/16] 0.0, 128
        %933 = vxpose.xlu0.b32.cont [14/16] 0.0, 128
        %934 = vxpose.xlu0.b32.cont [15/16] 0.0, 128
        %935 = vxpose.xlu0.b32.end [16/16] 0.0, 128
        %v936 = vpop.trf.xlu0
        %v937 = vpop.trf.xlu0
        %v938 = vpop.trf.xlu0
        %v939 = vpop.trf.xlu0
        %v940 = vpop.trf.xlu0
        %v941 = vpop.trf.xlu0
        %v942 = vpop.trf.xlu0
        %v943 = vpop.trf.xlu0
        %v944 = vpop.trf.xlu0
        %v945 = vpop.trf.xlu0
        %v946 = vpop.trf.xlu0
        %v947 = vpop.trf.xlu0
        %v948 = vpop.trf.xlu0
        %v949 = vpop.trf.xlu0
        %v950 = vpop.trf.xlu0
        %v951 = vpop.trf.xlu0
        %v953 = vsel %vm480, %v936, 0
        %v956 = vsel %vm480, %v937, 0
        %v959 = vsel %vm480, %v938, 0
        %v962 = vsel %vm480, %v939, 0
        %v965 = vsel %vm480, %v940, 0
        %v968 = vsel %vm480, %v941, 0
        %v971 = vsel %vm480, %v942, 0
        %v974 = vsel %vm480, %v943, 0
        %v977 = vsel %vm480, %v944, 0
        %v980 = vsel %vm480, %v945, 0
        %v983 = vsel %vm480, %v946, 0
        %v986 = vsel %vm480, %v947, 0
        %v989 = vsel %vm480, %v948, 0
        %v992 = vsel %vm480, %v949, 0
        %v995 = vsel %vm480, %v950, 0
        %v998 = vsel %vm480, %v951, 0
        %1000 = vmatprep.subr.mxu0 0.0
        %1001 = vmatpush1.msra.mxu0 0.0
        %1002 = vmatprep.subr.mxu0 0.0
        %1003 = vmatpush1.msra.mxu0 0.0
        %1004 = vmatprep.subr.mxu0 0.0
        %1005 = vmatpush1.msra.mxu0 0.0
        %1006 = vmatprep.subr.mxu0 0.0
        %1007 = vmatpush1.msra.mxu0 0.0
        %1008 = vmatprep.subr.mxu0 0.0
        %1009 = vmatpush1.msra.mxu0 0.0
        %1010 = vmatprep.subr.mxu0 0.0
        %1011 = vmatpush1.msra.mxu0 0.0
        %1012 = vmatprep.subr.mxu0 0.0
        %1013 = vmatpush1.msra.mxu0 0.0
        %1014 = vmatprep.subr.mxu0 0.0
        %1015 = vmatpush1.msra.mxu0 0.0
        %1016 = vmatprep.subr.mxu0 0.0
        %1017 = vmatpush1.msra.mxu0 0.0
        %1018 = vmatprep.subr.mxu0 0.0
        %1019 = vmatpush1.msra.mxu0 0.0
        %1020 = vmatprep.subr.mxu0 0.0
        %1021 = vmatpush1.msra.mxu0 0.0
        %1022 = vmatprep.subr.mxu0 0.0
        %1023 = vmatpush1.msra.mxu0 0.0
        %1024 = vmatprep.subr.mxu0 0.0
        %1025 = vmatpush1.msra.mxu0 0.0
        %1026 = vmatprep.subr.mxu0 0.0
        %1027 = vmatpush1.msra.mxu0 0.0
        %1028 = vmatprep.subr.mxu0 0.0
        %1029 = vmatpush1.msra.mxu0 0.0
        %1030 = vmatprep.subr.mxu0 %v642
        %1031 = vmatpush1.msra.mxu0 %v640
        %1032 = vmatprep.subr.mxu0 0.0
        %1033 = vmatpush2.msra.mxu0 0.0
        %1034 = vmatprep.subr.mxu0 0.0
        %1035 = vmatpush2.msra.mxu0 0.0
        %1036 = vmatprep.subr.mxu0 0.0
        %1037 = vmatpush2.msra.mxu0 0.0
        %1038 = vmatprep.subr.mxu0 0.0
        %1039 = vmatpush2.msra.mxu0 0.0
        %1040 = vmatprep.subr.mxu0 0.0
        %1041 = vmatpush2.msra.mxu0 0.0
        %1042 = vmatprep.subr.mxu0 0.0
        %1043 = vmatpush2.msra.mxu0 0.0
        %1044 = vmatprep.subr.mxu0 0.0
        %1045 = vmatpush2.msra.mxu0 0.0
        %1046 = vmatprep.subr.mxu0 0.0
        %1047 = vmatpush2.msra.mxu0 0.0
        %1048 = vmatprep.subr.mxu0 0.0
        %1049 = vmatpush2.msra.mxu0 0.0
        %1050 = vmatprep.subr.mxu0 0.0
        %1051 = vmatpush2.msra.mxu0 0.0
        %1052 = vmatprep.subr.mxu0 0.0
        %1053 = vmatpush2.msra.mxu0 0.0
        %1054 = vmatprep.subr.mxu0 0.0
        %1055 = vmatpush2.msra.mxu0 0.0
        %1056 = vmatprep.subr.mxu0 0.0
        %1057 = vmatpush2.msra.mxu0 0.0
        %1058 = vmatprep.subr.mxu0 0.0
        %1059 = vmatpush2.msra.mxu0 0.0
        %1060 = vmatprep.subr.mxu0 0.0
        %1061 = vmatpush2.msra.mxu0 0.0
        %1062 = vmatprep.subr.mxu0 0.0
        %1063 = vmatpush2.msra.mxu0 0.0
        %1064 = vmatprep.mubr.f32.mxu0 0.0
        %1065 = vmatmul.mubr.f32.gmra.mxu0 %v953
        %v1066 = vpop.f32.mrf.mxu0
        %v1067 = vadd.f32 0.0, %v1066
        %v1068 = vpop.f32.mrf.mxu0
        %v1069 = vadd.f32 0.0, %v1068
        %1070 = vmatprep.mubr.f32.mxu0 0.0
        %1071 = vmatmul.mubr.f32.gmra.mxu0 %v956
        %v1072 = vpop.f32.mrf.mxu0
        %v1073 = vadd.f32 0.0, %v1072
        %v1074 = vpop.f32.mrf.mxu0
        %v1075 = vadd.f32 0.0, %v1074
        %1076 = vmatprep.mubr.f32.mxu0 0.0
        %1077 = vmatmul.mubr.f32.gmra.mxu0 %v959
        %v1078 = vpop.f32.mrf.mxu0
        %v1079 = vadd.f32 0.0, %v1078
        %v1080 = vpop.f32.mrf.mxu0
        %v1081 = vadd.f32 0.0, %v1080
        %1082 = vmatprep.mubr.f32.mxu0 0.0
        %1083 = vmatmul.mubr.f32.gmra.mxu0 %v962
        %v1084 = vpop.f32.mrf.mxu0
        %v1085 = vadd.f32 0.0, %v1084
        %v1086 = vpop.f32.mrf.mxu0
        %v1087 = vadd.f32 0.0, %v1086
        %1088 = vmatprep.mubr.f32.mxu0 0.0
        %1089 = vmatmul.mubr.f32.gmra.mxu0 %v965
        %v1090 = vpop.f32.mrf.mxu0
        %v1091 = vadd.f32 0.0, %v1090
        %v1092 = vpop.f32.mrf.mxu0
        %v1093 = vadd.f32 0.0, %v1092
        %1094 = vmatprep.mubr.f32.mxu0 0.0
        %1095 = vmatmul.mubr.f32.gmra.mxu0 %v968
        %v1096 = vpop.f32.mrf.mxu0
        %v1097 = vadd.f32 0.0, %v1096
        %v1098 = vpop.f32.mrf.mxu0
        %v1099 = vadd.f32 0.0, %v1098
        %1100 = vmatprep.mubr.f32.mxu0 0.0
        %1101 = vmatmul.mubr.f32.gmra.mxu0 %v971
        %v1102 = vpop.f32.mrf.mxu0
        %v1103 = vadd.f32 0.0, %v1102
        %v1104 = vpop.f32.mrf.mxu0
        %v1105 = vadd.f32 0.0, %v1104
        %1106 = vmatprep.mubr.f32.mxu0 0.0
        %1107 = vmatmul.mubr.f32.gmra.mxu0 %v974
        %v1108 = vpop.f32.mrf.mxu0
        %v1109 = vadd.f32 0.0, %v1108
        %v1110 = vpop.f32.mrf.mxu0
        %v1111 = vadd.f32 0.0, %v1110
        %1112 = vmatprep.mubr.f32.mxu0 0.0
        %1113 = vmatmul.mubr.f32.gmra.mxu0 %v977
        %v1114 = vpop.f32.mrf.mxu0
        %v1115 = vadd.f32 0.0, %v1114
        %v1116 = vpop.f32.mrf.mxu0
        %v1117 = vadd.f32 0.0, %v1116
        %1118 = vmatprep.mubr.f32.mxu0 0.0
        %1119 = vmatmul.mubr.f32.gmra.mxu0 %v980
        %v1120 = vpop.f32.mrf.mxu0
        %v1121 = vadd.f32 0.0, %v1120
        %v1122 = vpop.f32.mrf.mxu0
        %v1123 = vadd.f32 0.0, %v1122
        %1124 = vmatprep.mubr.f32.mxu0 0.0
        %1125 = vmatmul.mubr.f32.gmra.mxu0 %v983
        %v1126 = vpop.f32.mrf.mxu0
        %v1127 = vadd.f32 0.0, %v1126
        %v1128 = vpop.f32.mrf.mxu0
        %v1129 = vadd.f32 0.0, %v1128
        %1130 = vmatprep.mubr.f32.mxu0 0.0
        %1131 = vmatmul.mubr.f32.gmra.mxu0 %v986
        %v1132 = vpop.f32.mrf.mxu0
        %v1133 = vadd.f32 0.0, %v1132
        %v1134 = vpop.f32.mrf.mxu0
        %v1135 = vadd.f32 0.0, %v1134
        %1136 = vmatprep.mubr.f32.mxu0 0.0
        %1137 = vmatmul.mubr.f32.gmra.mxu0 %v989
        %v1138 = vpop.f32.mrf.mxu0
        %v1139 = vadd.f32 0.0, %v1138
        %v1140 = vpop.f32.mrf.mxu0
        %v1141 = vadd.f32 0.0, %v1140
        %1142 = vmatprep.mubr.f32.mxu0 0.0
        %1143 = vmatmul.mubr.f32.gmra.mxu0 %v992
        %v1144 = vpop.f32.mrf.mxu0
        %v1145 = vadd.f32 0.0, %v1144
        %v1146 = vpop.f32.mrf.mxu0
        %v1147 = vadd.f32 0.0, %v1146
        %1148 = vmatprep.mubr.f32.mxu0 0.0
        %1149 = vmatmul.mubr.f32.gmra.mxu0 %v995
        %v1150 = vpop.f32.mrf.mxu0
        %v1151 = vadd.f32 0.0, %v1150
        %v1152 = vpop.f32.mrf.mxu0
        %v1153 = vadd.f32 0.0, %v1152
        %1154 = vmatprep.mubr.f32.mxu0 0.0
        %1155 = vmatmul.mubr.f32.gmra.mxu0 %v998
        %v1156 = vpop.f32.mrf.mxu0
        %v1157 = vadd.f32 0.0, %v1156
        %v1158 = vpop.f32.mrf.mxu0
        %v1159 = vadd.f32 0.0, %v1158
        %1160 = vdwg.mxu0
        %v1161 = vmax.f32 %v1067, %v1079
        %v1162 = vmax.f32 %v1073, %v1085
        %v1163 = vmax.f32 %v1161, %v1091
        %v1164 = vmax.f32 %v1162, %v1097
        %v1165 = vmax.f32 %v1163, %v1103
        %v1166 = vmax.f32 %v1164, %v1109
        %v1167 = vmax.f32 %v1165, %v1115
        %v1168 = vmax.f32 %v1166, %v1121
        %v1169 = vmax.f32 %v1167, %v1127
        %v1170 = vmax.f32 %v1168, %v1133
        %v1171 = vmax.f32 %v1169, %v1139
        %v1172 = vmax.f32 %v1170, %v1145
        %v1173 = vmax.f32 %v1171, %v1151
        %v1174 = vmax.f32 %v1172, %v1157
        %v1175 = vmax.f32 %v1173, %v1174
        %v1176 = vrot.slane %v1175, 4
        %v1177 = vmax.f32 %v1175, %v1176
        %v1178 = vrot.slane %v1177, 2
        %v1179 = vmax.f32 %v1177, %v1178
        %v1180 = vrot.slane %v1179, 1
        %v1181 = vmax.f32 %v1179, %v1180
        %v1182 = vmax.f32 %v1069, %v1081
        %v1183 = vmax.f32 %v1075, %v1087
        %v1184 = vmax.f32 %v1182, %v1093
        %v1185 = vmax.f32 %v1183, %v1099
        %v1186 = vmax.f32 %v1184, %v1105
        %v1187 = vmax.f32 %v1185, %v1111
        %v1188 = vmax.f32 %v1186, %v1117
        %v1189 = vmax.f32 %v1187, %v1123
        %v1190 = vmax.f32 %v1188, %v1129
        %v1191 = vmax.f32 %v1189, %v1135
        %v1192 = vmax.f32 %v1190, %v1141
        %v1193 = vmax.f32 %v1191, %v1147
        %v1194 = vmax.f32 %v1192, %v1153
        %v1195 = vmax.f32 %v1193, %v1159
        %v1196 = vmax.f32 %v1194, %v1195
        %v1197 = vrot.slane %v1196, 4
        %v1198 = vmax.f32 %v1196, %v1197
        %v1199 = vrot.slane %v1198, 2
        %v1200 = vmax.f32 %v1198, %v1199
        %v1201 = vrot.slane %v1200, 1
        %v1202 = vmax.f32 %v1200, %v1201
        %v1203 = vmax.f32 %v825, %v1181
        %v1204 = vmax.f32 %v846, %v1202
        %v1205 = vld [vmem:[#allocation3] sm:$0x3]
        %v1208 = vcombine.low %v1203, %v1204
        %v1210 = vunpack.c.l.s4 1966171168
        %v1211 = vunpack.c.0.s8 %v1210
        %v1212 = vlaneseq
        %v1213 = vshrl.u32 %v1212, 7
        %v1214 = vsub.s32 %v1211, %v1213
        %v1215 = vrot.slane %v1208, %v1214
        %v1217 = vunpack.c.l.s4 1966171168
        %v1218 = vunpack.c.0.s8 %v1217
        %v1219 = vlaneseq
        %v1220 = vshrl.u32 %v1219, 7
        %v1221 = vsub.s32 %v1218, %v1220
        %v1222 = vrot.slane %v1215, %v1221
        %v1224 = vadd.f32 %v1205, %v1222
        %v1225 = vlaneseq
        %vm1226 = vcmp.ge.s32.totalorder %v1225, 0
        %vm1227 = vcmp.lt.s32.totalorder %v1225, 256
        %vm1228 = vmand %vm1226, %vm1227
        %1229 = vst.msk [vmem:[#allocation3] sm:$0x3] %vm1228, %v1224
        %p1230 = scmp.eq.s32.totalorder %s31, 1
        // Predicated region
        $region65: #{tpu_custom_call.1} parent=51 // pred_check
          %p1231 = pneg %p1230
        $region66: #{tpu_custom_call.1} parent=51 // pred_check_branch
          %1233 = sbr.rel (%p1231) target = $region68
        $region67: #{tpu_custom_call.1} parent=51 // pred_region
          %v1234 = vld [vmem:[#allocation3] sm:$0x3]
          %v1235 = vmul.f32 %v1234, 0.25
          %v1237 = vlaneseq
          %v1238 = vshrl.u32 %v1237, 7
          %v1239 = vsub.s32 0, %v1238
          %v1240 = vrot.slane %v1235, %v1239
          %v1241 = vlaneseq
          %v1242 = vshrl.u32 %v1241, 7
          %v1243 = vsub.s32 1, %v1242
          %v1244 = vrot.slane %v1235, %v1243
          %vm1247 = vcmask 1040384
          %v1248 = vsel %vm1247, %v1240, -inf
          %v1249 = vsel %vm1247, %v1244, -inf
          %v1250 = vmax.f32 %v1248, %v1249
          %1251 = vmax.xlane.f32.xlu0 %v1250
          %v1252 = vpop.xlane.xlu0 %1251
          %v1254 = vlaneseq
          %v1255 = vshrl.u32 %v1254, 7
          %v1256 = vsub.s32 0, %v1255
          %v1257 = vrot.slane %v1252, %v1256
          %v1259 = vsub.f32 %v1235, %v1257
          %v1260 = vmul.f32 %v1259, 1.442695
          %v1261 = vpow.pop %v1260
          %v1263 = vlaneseq
          %v1264 = vshrl.u32 %v1263, 7
          %v1265 = vsub.s32 0, %v1264
          %v1266 = vrot.slane %v1261, %v1265
          %v1267 = vlaneseq
          %v1268 = vshrl.u32 %v1267, 7
          %v1269 = vsub.s32 1, %v1268
          %v1270 = vrot.slane %v1261, %v1269
          %v1273 = vsel %vm1247, %v1266, 0.0
          %v1274 = vsel %vm1247, %v1270, 0.0
          %v1275 = vadd.f32 %v1273, %v1274
          %1276 = vadd.xlane.f32.xlu0 %v1275
          %v1277 = vpop.xlane.xlu0 %1276
          %v1279 = vlaneseq
          %v1280 = vshrl.u32 %v1279, 7
          %v1281 = vsub.s32 0, %v1280
          %v1282 = vrot.slane %v1277, %v1281
          %v1284 = vrcp.pop %v1282
          %v1285 = vmul.f32 %v1261, %v1284
          %v1286 = vld [vmem:[%s320] sm:$0xff]
          %v1288 = vlaneseq
          %v1289 = vshrl.u32 %v1288, 7
          %v1290 = vsub.s32 0, %v1289
          %v1291 = vrot.slane %v1285, %v1290
          %v1292 = vlaneseq
          %v1293 = vshrl.u32 %v1292, 7
          %v1294 = vsub.s32 1, %v1293
          %v1295 = vrot.slane %v1285, %v1294
          %v1296 = vcombine.low %v1291, %v1295
          %v1298 = vmul.f32 %v1286, %v1296
          %v1299 = vld [vmem:[%s6] sm:$0xf]
          %v1300 = vld [vmem:[%s7] sm:$0xf]
          %1302 = vset.pattern.permute.xlu0 0
          %1303 = vperm.xlu0 %1302, %v1300
          %v1304 = vpop.permute.xlu0 %1303
          %v1307 = vcombine.high %v1298, %v1298
          %v1309 = vsel %vm480, %v1299, 0
          %v1311 = vsel %vm484, %v1298, 0
          %v1313 = vsel %vm484, %v1307, 0
          %1315 = vmatprep.subr.mxu0 0.0
          %1316 = vmatpush1.msra.mxu0 0.0
          %1317 = vmatprep.subr.mxu0 0.0
          %1318 = vmatpush1.msra.mxu0 0.0
          %1319 = vmatprep.subr.mxu0 0.0
          %1320 = vmatpush1.msra.mxu0 0.0
          %1321 = vmatprep.subr.mxu0 0.0
          %1322 = vmatpush1.msra.mxu0 0.0
          %1323 = vmatprep.subr.mxu0 0.0
          %1324 = vmatpush1.msra.mxu0 0.0
          %1325 = vmatprep.subr.mxu0 0.0
          %1326 = vmatpush1.msra.mxu0 0.0
          %1327 = vmatprep.subr.mxu0 0.0
          %1328 = vmatpush1.msra.mxu0 0.0
          %1329 = vmatprep.subr.mxu0 0.0
          %1330 = vmatpush1.msra.mxu0 0.0
          %1331 = vmatprep.subr.mxu0 0.0
          %1332 = vmatpush1.msra.mxu0 0.0
          %1333 = vmatprep.subr.mxu0 0.0
          %1334 = vmatpush1.msra.mxu0 0.0
          %1335 = vmatprep.subr.mxu0 0.0
          %1336 = vmatpush1.msra.mxu0 0.0
          %1337 = vmatprep.subr.mxu0 0.0
          %1338 = vmatpush1.msra.mxu0 0.0
          %1339 = vmatprep.subr.mxu0 0.0
          %1340 = vmatpush1.msra.mxu0 0.0
          %1341 = vmatprep.subr.mxu0 0.0
          %1342 = vmatpush1.msra.mxu0 0.0
          %1343 = vmatprep.subr.mxu0 0.0
          %1344 = vmatpush1.msra.mxu0 0.0
          %1345 = vmatprep.subr.mxu0 %v1313
          %1346 = vmatpush1.msra.mxu0 %v1311
          %1347 = vmatprep.subr.mxu0 0.0
          %1348 = vmatpush2.msra.mxu0 0.0
          %1349 = vmatprep.subr.mxu0 0.0
          %1350 = vmatpush2.msra.mxu0 0.0
          %1351 = vmatprep.subr.mxu0 0.0
          %1352 = vmatpush2.msra.mxu0 0.0
          %1353 = vmatprep.subr.mxu0 0.0
          %1354 = vmatpush2.msra.mxu0 0.0
          %1355 = vmatprep.subr.mxu0 0.0
          %1356 = vmatpush2.msra.mxu0 0.0
          %1357 = vmatprep.subr.mxu0 0.0
          %1358 = vmatpush2.msra.mxu0 0.0
          %1359 = vmatprep.subr.mxu0 0.0
          %1360 = vmatpush2.msra.mxu0 0.0
          %1361 = vmatprep.subr.mxu0 0.0
          %1362 = vmatpush2.msra.mxu0 0.0
          %1363 = vmatprep.subr.mxu0 0.0
          %1364 = vmatpush2.msra.mxu0 0.0
          %1365 = vmatprep.subr.mxu0 0.0
          %1366 = vmatpush2.msra.mxu0 0.0
          %1367 = vmatprep.subr.mxu0 0.0
          %1368 = vmatpush2.msra.mxu0 0.0
          %1369 = vmatprep.subr.mxu0 0.0
          %1370 = vmatpush2.msra.mxu0 0.0
          %1371 = vmatprep.subr.mxu0 0.0
          %1372 = vmatpush2.msra.mxu0 0.0
          %1373 = vmatprep.subr.mxu0 0.0
          %1374 = vmatpush2.msra.mxu0 0.0
          %1375 = vmatprep.subr.mxu0 0.0
          %1376 = vmatpush2.msra.mxu0 0.0
          %1377 = vmatprep.subr.mxu0 0.0
          %1378 = vmatpush2.msra.mxu0 0.0
          %1379 = vmatprep.mubr.f32.mxu0 0.0
          %1380 = vmatmul.mubr.f32.gmra.mxu0 %v1309
          %v1381 = vpop.f32.mrf.mxu0
          %v1382 = vadd.f32 %v1304, %v1381
          %v1383 = vpop.f32.mrf.mxu0
          %v1384 = vadd.f32 %v1304, %v1383
          %1385 = vdwg.mxu0
          %v1388 = vcombine.low %v1382, %v1384
          %1390 = vst [vmem:[%s361] sm:$0xff] %v1388
        $region68: #{tpu_custom_call.1} parent=51 // pred_fallthru
          _
        %s1391 = sand.u32 %s224, 1
        %s1392 = scalar_lea.sflag [#allocation6], %s1391
        %s1393 = sand.u32 %s224, 1
        %s1394 = smul.addr %s1393, 8
        %s1395 = scalar_lea.vmem [#allocation9], %s1394
        // Predicated region
        $region69: #{tpu_custom_call.1} parent=51 // pred_check
          %p1396 = pneg %p234
        $region70: #{tpu_custom_call.1} parent=51 // pred_check_branch
          %1398 = sbr.rel (%p1396) target = $region72
        $region71: #{tpu_custom_call.1} parent=51 // pred_region
          %s1400 = ssub.s32 128, 128
          %1401 = vsyncadd %s1392, %s1400
          %s1402 = smul.addr %s30, 2
          %s1403 = smul.addr %s1402, 64
          %s1404 = scalar_lea.hbm %s8, %s1403
          %s1406 = sshll.u32 %s1395, 4
          %s1407 = int_to_ptr.vmem [resolvable:$true] %s1406
          %1409 = dma.vmem_to_hbm [thread:$0]  %s1407, 128, %s1404, %s1392
        $region72: #{tpu_custom_call.1} parent=51 // pred_fallthru
          _
      $region52: #{tpu_custom_call.1} parent=5 // pred_fallthru
        _
      %p1410 = scmp.le.s32.totalorder 2, %s21
      // Predicated region
      $region73: #{tpu_custom_call.1} parent=5 // pred_check
        %p1411 = pneg %p1410
      $region74: #{tpu_custom_call.1} parent=5 // pred_check_branch
        %1413 = sbr.rel (%p1411) target = $region76
      $region75: #{tpu_custom_call.1} parent=5 // pred_region
        %s1414 = ssub.s32 %s21, 2
        // Predicated region
        $region77: #{tpu_custom_call.1} parent=75 // pred_check
          %p1415 = pneg %p240
        $region78: #{tpu_custom_call.1} parent=75 // pred_check_branch
          %1417 = sbr.rel (%p1415) target = $region80
        $region79: #{tpu_custom_call.1} parent=75 // pred_region
          %s1418 = sand.u32 %s225, 1
          %s1419 = scalar_lea.sflag [#allocation6], %s1418
          %s1420 = sand.u32 %s225, 1
          %s1421 = smul.addr %s1420, 8
          %s1422 = scalar_lea.vmem [#allocation9], %s1421
          %1423 = dma.done %s1419, 128
        $region80: #{tpu_custom_call.1} parent=75 // pred_fallthru
          _
      $region76: #{tpu_custom_call.1} parent=5 // pred_fallthru
        _
    $region6: #{tpu_custom_call.1} parent=1 // loop_footer
      %s25 = sadd.s32 1, %s21
    $region7: #{tpu_custom_call.1} parent=1 // loop_footer_branch
      %20 = sbr.rel target = $region3
    $region8: #{tpu_custom_call.1} parent=1 // loop_exit
      _
    %1424 = vsyncpa [#allocation5], 1
    %s1425 = scalar_lea.sflag [#allocation5], 1
    %1426 = vsyncpa %s1425, 1
    %1427 = vsyncpa [#allocation8], 1
    %1428 = vsyncpa [#allocation6], 1
    %s1429 = scalar_lea.sflag [#allocation6], 1
    %1430 = vsyncpa %s1429, 1

</llo_original>
